<compile_context>
chip_gen: v7x
topology: tpu7x:2x2x1
jax: 0.10.0
libtpu: 0.0.40
codegen_flags: <defaults>
</compile_context>

<pallas_src>
import math

import jax
import jax.numpy as jnp
from jax import lax
from jax.experimental import pallas as pl
from jax.experimental.pallas import tpu as pltpu

# ---------------- Model configuration (the `args` of LSTM_Text) ----------------
VOCAB = 50        # args.embed_num
EMBED_DIM = 16    # args.embed_dim
HID_DIM = 32      # args.hid_dim
NUM_LAYERS = 1    # args.num_layers
NUM_DIR = 1       # args.num_dir  (unidirectional LSTM)
NUM_HEADS = 2     # SelfAttention num_heads
USE_ATT = True    # args.use_att
D = NUM_DIR * HID_DIM          # lstm_output_dim

B = 2             # pairs per call (raise this for real throughput)
T = 8             # sequence length (full length -> pack/unpack is identity)
BP = 8            # padded effective batch: 2*B real rows + zero rows -> one 8-sublane tile
DK = D // NUM_HEADS
SCALE = 1.0 / math.sqrt(DK)    # == SelfAttention._norm_fact
NEG_INF = -1e9

# ---- packed weight-slab row offsets (all multiples of 8) ----
VOCAB_PAD = 56                 # VOCAB rounded up to a sublane multiple
R_TABLE = 0                    # rows   0..55 : emb @ W_ih^T + b   (gate order i,f,o,g)
R_WHH = R_TABLE + VOCAB_PAD    # rows  56..87 : W_hh^T             (gate order i,f,o,g)
R_ATTN = R_WHH + HID_DIM       # rows  88..119: [Wq^T | Wk^T | Wv^T | W1a^T]
R_HEAD = R_ATTN + HID_DIM      # rows 120..151: [W1b^T | w2 | 0...]
R_BIAS = R_HEAD + HID_DIM      # rows 152..159: row 152 = [b1 | b2 | 0...]
SLAB_ROWS = R_BIAS + 8         # 160


# =============================== Fused Pallas kernel ===============================

def fused_kernel(tok_ref, slab_ref, o_ref, h_scr):
    """Entire LSTM_Text forward for both branches in one kernel.

    tok_ref : (T*BP, 1) int32 time-major token rows (row = t*BP + b);
              rows with b >= 2*B are zero padding.
    slab_ref: (SLAB_ROWS, 128) f32 packed weights (see module-level offsets).
    o_ref   : (B, 1) sigmoid logits.
    h_scr   : (T*BP, H) VMEM scratch holding every hidden state (lstm_out).
    """
    H = HID_DIM

    # ---- Folded embedding + input projection + bias: ONE one-hot matmul ----
    tok = tok_ref[...]                                                     # (T*BP, 1)
    onehot = (tok == lax.broadcasted_iota(jnp.int32, (T * BP, VOCAB_PAD), 1)
              ).astype(jnp.float32)                                        # (T*BP, Vpad)
    gates_x = jnp.dot(onehot, slab_ref[R_TABLE:R_TABLE + VOCAB_PAD, :],
                      preferred_element_type=jnp.float32)                  # (T*BP, 4H), bias folded in

    # ---- LSTM recurrence: aligned 8-row tiles, gate columns (i, f, o | g) ----
    whh = slab_ref[R_WHH:R_WHH + H, :]                                     # hoisted (H, 4H)
    h = jnp.zeros((BP, H), jnp.float32)
    c = jnp.zeros((BP, H), jnp.float32)
    for t in range(T):                                                     # static unroll (T=8)
        gates = gates_x[t * BP:(t + 1) * BP, :] + jnp.dot(
            h, whh, preferred_element_type=jnp.float32)                    # (BP, 4H)
        sig = jax.nn.sigmoid(gates[:, :3 * H])                             # i, f, o in one pass
        g = jnp.tanh(gates[:, 3 * H:])
        c = sig[:, H:2 * H] * c + sig[:, :H] * g
        h = sig[:, 2 * H:3 * H] * jnp.tanh(c)
        h_scr[t * BP:(t + 1) * BP, :] = h                                  # lstm_out stays in VMEM

    # ---- Multi-head self-attention, last query only ----
    if USE_ATT:
        flat = h_scr[...]                                                  # (T*BP, H) time-major
        kv = jnp.dot(flat, slab_ref[R_ATTN:R_ATTN + H, D:3 * D],
                     preferred_element_type=jnp.float32)                   # (T*BP, 2D) = [K | V]
        q = jnp.dot(h, slab_ref[R_ATTN:R_ATTN + H, 0:D],
                    preferred_element_type=jnp.float32)                    # (BP, D): last step only
        k_t = jnp.transpose(kv[:, :D])                                     # (D, T*BP): ONE transpose

        # Block-diagonal mask generated in-kernel: key row = t*BP + b.
        col_b = lax.broadcasted_iota(jnp.int32, (BP, T * BP), 1) & (BP - 1)
        row_b = lax.broadcasted_iota(jnp.int32, (BP, T * BP), 0)
        mask = jnp.where(col_b == row_b, 0.0, NEG_INF).astype(jnp.float32)

        heads = []
        for hd in range(NUM_HEADS):                                        # static unroll (2 heads)
            sl = slice(hd * DK, (hd + 1) * DK)
            s = jnp.dot(q[:, sl], k_t[sl, :],
                        preferred_element_type=jnp.float32) * SCALE + mask  # (BP, T*BP)
            # No max-subtraction: scores are tanh-bounded and tiny with this
            # init; masked entries underflow exp() to exactly 0.
            p = jnp.exp(s)
            p = p * pl.reciprocal(jnp.sum(p, axis=-1, keepdims=True), approx=True)
            heads.append(jnp.dot(p, kv[:, D + hd * DK:D + (hd + 1) * DK],
                                 preferred_element_type=jnp.float32))      # (BP, DK)
        feat = jnp.concatenate(heads, axis=-1)                             # (BP, D)
    else:
        feat = h                                                           # last hidden state

    # ---- Comparison head: rows 0..B-1 = branch a, rows B..2B-1 = branch b ----
    xa = feat[:B, :]
    xb = feat[B:2 * B, :]
    d_abs = jnp.abs(xa - xb)
    d_mul = xa * xb
    hid = (jnp.dot(d_abs, slab_ref[R_ATTN:R_ATTN + H, 3 * D:4 * D],
                   preferred_element_type=jnp.float32)
           + jnp.dot(d_mul, slab_ref[R_HEAD:R_HEAD + H, 0:D],
                     preferred_element_type=jnp.float32)
           + slab_ref[R_BIAS:R_BIAS + 1, 0:D])
    hid = jnp.maximum(hid, 0.0)                                            # ReLU
    z = (jnp.dot(hid, slab_ref[R_HEAD:R_HEAD + H, D:D + 1],
                 preferred_element_type=jnp.float32)
         + slab_ref[R_BIAS:R_BIAS + 1, D:D + 1])
    o_ref[...] = jax.nn.sigmoid(z)


# =============================== Pallas wrapper ==============================

def fused_forward(tok_tm, slab):
    # Gridless pallas_call: single program, both inputs land fully in VMEM.
    return pl.pallas_call(
        fused_kernel,
        out_shape=jax.ShapeDtypeStruct((B, 1), jnp.float32),
        scratch_shapes=[pltpu.VMEM((T * BP, HID_DIM), jnp.float32)],
    )(tok_tm, slab)


@jax.jit
def model_forward(tokens_a, tokens_b, slab):
    # Both branches share one kernel call: concat along batch and zero-pad to
    # BP=8 rows so every per-step tile in the kernel is sublane-aligned.
    tokens = jnp.concatenate([tokens_a, tokens_b], axis=0)                 # (2B, T)
    tokens = jnp.pad(tokens, ((0, BP - 2 * B), (0, 0)))                    # (BP, T), token 0 padding
    tok_tm = tokens.T.reshape(T * BP, 1)                                   # time-major rows
    return fused_forward(tok_tm, slab)


# =============================== Parameter init ===============================

def init_params(key):
    ks = jax.random.split(key, 12)
    u = lambda k, s, sc: jax.random.uniform(k, s, jnp.float32, -sc, sc)
    p = {}
    p["emb"] = u(ks[0], (VOCAB, EMBED_DIM), 1.0)
    s_l = 1.0 / math.sqrt(HID_DIM)
    p["wih_t"] = u(ks[1], (EMBED_DIM, 4 * HID_DIM), s_l)   # weight_ih_l0^T (i,f,g,o)
    p["whh_t"] = u(ks[2], (HID_DIM, 4 * HID_DIM), s_l)     # weight_hh_l0^T (i,f,g,o)
    p["b_lstm"] = u(ks[3], (1, 4 * HID_DIM), s_l)          # b_ih + b_hh combined
    s_q = 1.0 / math.sqrt(D)
    p["wq_t"] = u(ks[4], (D, D), s_q)
    p["wk_t"] = u(ks[5], (D, D), s_q)
    p["wv_t"] = u(ks[6], (D, D), s_q)
    s_1 = 1.0 / math.sqrt(2 * D)
    p["w1a_t"] = u(ks[7], (D, D), s_1)                     # W1^T rows acting on |x-y|
    p["w1b_t"] = u(ks[8], (D, D), s_1)                     # W1^T rows acting on x*y
    p["b1"] = u(ks[9], (1, D), s_1)
    s_2 = 1.0 / math.sqrt(D)
    p["w2_t"] = u(ks[10], (D, 1), s_2)
    p["b2"] = u(ks[11], (1, 1), s_2)
    return p


def _reorder_gates(w):
    # PyTorch LSTM gate order (i, f, g, o) -> kernel order (i, f, o, g)
    i, f, g, o = jnp.split(w, 4, axis=-1)
    return jnp.concatenate([i, f, o, g], axis=-1)


def prepare_params(p):
    """One-time host-side repack into a single (SLAB_ROWS, 128) f32 slab."""
    # Fold embedding + W_ih + (b_ih + b_hh) into one pre-activation table.
    wih = _reorder_gates(p["wih_t"])                                       # (E, 4H)
    bias = _reorder_gates(p["b_lstm"])                                     # (1, 4H)
    table = p["emb"] @ wih + bias                                          # (VOCAB, 4H)
    table = jnp.pad(table, ((0, VOCAB_PAD - VOCAB), (0, 0)))               # (VOCAB_PAD, 4H)
    whh = _reorder_gates(p["whh_t"])                                       # (H, 4H)
    attn_rows = jnp.concatenate(
        [p["wq_t"], p["wk_t"], p["wv_t"], p["w1a_t"]], axis=1)             # (H, 128)
    head_rows = jnp.concatenate(
        [p["w1b_t"], p["w2_t"],
         jnp.zeros((D, 128 - D - 1), jnp.float32)], axis=1)                # (H, 128)
    bias_row = jnp.concatenate(
        [p["b1"], p["b2"], jnp.zeros((1, 128 - D - 1), jnp.float32)], axis=1)
    bias_rows = jnp.pad(bias_row, ((0, 7), (0, 0)))                        # (8, 128)
    slab = jnp.concatenate([table, whh, attn_rows, head_rows, bias_rows], axis=0)
    assert slab.shape == (SLAB_ROWS, 128)
    return slab


# ============================ Pure-JAX reference ==============================

def ref_forward(tokens_a, tokens_b, p):
    def branch(tokens):
        x = p["emb"][tokens]
        Bn, Tn, _ = x.shape
        h = jnp.zeros((Bn, HID_DIM), jnp.float32)
        c = jnp.zeros((Bn, HID_DIM), jnp.float32)
        outs = []
        for t in range(Tn):
            g = x[:, t] @ p["wih_t"] + h @ p["whh_t"] + p["b_lstm"]
            i_ = jax.nn.sigmoid(g[:, :HID_DIM])
            f_ = jax.nn.sigmoid(g[:, HID_DIM:2 * HID_DIM])
            g_ = jnp.tanh(g[:, 2 * HID_DIM:3 * HID_DIM])
            o_ = jax.nn.sigmoid(g[:, 3 * HID_DIM:])
            c = f_ * c + i_ * g_
            h = o_ * jnp.tanh(c)
            outs.append(h)
        lstm_out = jnp.stack(outs, axis=1)
        q = lstm_out @ p["wq_t"]
        k = lstm_out @ p["wk_t"]
        v = lstm_out @ p["wv_t"]
        dk = D // NUM_HEADS
        qh = q.reshape(Bn, Tn, NUM_HEADS, dk).transpose(0, 2, 1, 3)
        kh = k.reshape(Bn, Tn, NUM_HEADS, dk).transpose(0, 2, 1, 3)
        vh = v.reshape(Bn, Tn, NUM_HEADS, dk).transpose(0, 2, 1, 3)
        dist = jnp.einsum("bhqd,bhkd->bhqk", qh, kh) / math.sqrt(dk)
        dist = jax.nn.softmax(dist, axis=-1)
        att = jnp.einsum("bhqk,bhkd->bhqd", dist, vh).transpose(0, 2, 1, 3).reshape(Bn, Tn, D)
        return att[:, -1, :]

    xa, xb = branch(tokens_a), branch(tokens_b)
    cmp = jnp.concatenate([jnp.abs(xa - xb), xa * xb], axis=1)
    w1_t = jnp.concatenate([p["w1a_t"], p["w1b_t"]], axis=0)               # (2D, D)
    hh = jax.nn.relu(cmp @ w1_t + p["b1"])
    return jax.nn.sigmoid(hh @ p["w2_t"] + p["b2"])


# ==================================== Main ====================================

if __name__ == "__main__":
    import numpy as np

    key = jax.random.PRNGKey(0)
    kp, ka, kb = jax.random.split(key, 3)
    params = init_params(kp)
    weight_slab = prepare_params(params)

    tokens_a = jax.random.randint(ka, (B, T), 0, VOCAB, dtype=jnp.int32)
    tokens_b = jax.random.randint(kb, (B, T), 0, VOCAB, dtype=jnp.int32)

    out = model_forward(tokens_a, tokens_b, weight_slab)
    out = jax.block_until_ready(out)
    assert out.shape == (B, 1)

    ref = ref_forward(tokens_a, tokens_b, params)
    # Tolerance relaxed vs. the exact reference because of the EUP approximate
    # reciprocal in the softmax and the host-side embedding/W_ih fold; real
    # bugs (gate order, masking, slab layout) give errors orders of magnitude
    # larger than this.
    np.testing.assert_allclose(np.asarray(out), np.asarray(ref), rtol=2e-3, atol=2e-3)

    print("KERNEL_OK")
</pallas_src>

<mosaic_0001>
module attributes {stable_mosaic.version = 11 : i64} {
  func.func @fused_kernel(%arg0: memref<64x1xi32, #tpu.memory_space<vmem>>, %arg1: memref<160x128xf32, #tpu.memory_space<vmem>>, %arg2: memref<2x1xf32, #tpu.memory_space<vmem>>, %arg3: memref<64x32xf32, #tpu.memory_space<vmem>>) attributes {dimension_semantics = [], scalar_prefetch = 0 : i64, scratch_operands = 1 : i64, tpu.core_type = #tpu.core_type<tc>} {
    %c0 = arith.constant 0 : index
    %c0_0 = arith.constant 0 : index
    %0 = vector.load %arg0[%c0, %c0_0] : memref<64x1xi32, #tpu.memory_space<vmem>>, vector<64x1xi32>
    %1 = tpu.iota {dimensions = array<i32: 1>} : vector<64x56xi32>
    %2 = vector.broadcast %0 : vector<64x1xi32> to vector<64x56xi32>
    %3 = arith.cmpi eq, %2, %1 : vector<64x56xi32>
    %4 = arith.extui %3 : vector<64x56xi1> to vector<64x56xi32>
    %5 = arith.sitofp %4 : vector<64x56xi32> to vector<64x56xf32>
    %c0_1 = arith.constant 0 : index
    %c0_2 = arith.constant 0 : index
    %6 = vector.load %arg1[%c0_1, %c0_2] : memref<160x128xf32, #tpu.memory_space<vmem>>, vector<56x128xf32>
    %cst = arith.constant dense<0.000000e+00> : vector<64x128xf32>
    %7 = tpu.matmul %5, %6, %cst {dimension_numbers = #tpu.dot_dimension_numbers<[1], [0], [0], [1], [0, 0, 1, 1], [], []>} : vector<64x56xf32>, vector<56x128xf32>, vector<64x128xf32> -> vector<64x128xf32>
    %c56 = arith.constant 56 : index
    %c0_3 = arith.constant 0 : index
    %8 = vector.load %arg1[%c56, %c0_3] : memref<160x128xf32, #tpu.memory_space<vmem>>, vector<32x128xf32>
    %cst_4 = arith.constant 0.000000e+00 : f32
    %9 = vector.broadcast %cst_4 : f32 to vector<8x32xf32>
    %cst_5 = arith.constant 0.000000e+00 : f32
    %10 = vector.broadcast %cst_5 : f32 to vector<8x32xf32>
    %11 = vector.extract_strided_slice %7 {offsets = [0, 0], sizes = [8, 128], strides = [1, 1]} : vector<64x128xf32> to vector<8x128xf32>
    %cst_6 = arith.constant dense<0.000000e+00> : vector<8x128xf32>
    %12 = tpu.matmul %9, %8, %cst_6 {dimension_numbers = #tpu.dot_dimension_numbers<[1], [0], [0], [1], [0, 0, 1, 1], [], []>} : vector<8x32xf32>, vector<32x128xf32>, vector<8x128xf32> -> vector<8x128xf32>
    %13 = arith.addf %11, %12 : vector<8x128xf32>
    %14 = vector.extract_strided_slice %13 {offsets = [0, 0], sizes = [8, 96], strides = [1, 1]} : vector<8x128xf32> to vector<8x96xf32>
    %15 = arith.negf %14 : vector<8x96xf32>
    %16 = math.exp %15 : vector<8x96xf32>
    %cst_7 = arith.constant 1.000000e+00 : f32
    %17 = vector.broadcast %cst_7 : f32 to vector<8x96xf32>
    %18 = arith.addf %17, %16 : vector<8x96xf32>
    %19 = arith.divf %17, %18 : vector<8x96xf32>
    %20 = vector.extract_strided_slice %13 {offsets = [0, 96], sizes = [8, 32], strides = [1, 1]} : vector<8x128xf32> to vector<8x32xf32>
    %21 = math.tanh %20 : vector<8x32xf32>
    %22 = vector.extract_strided_slice %19 {offsets = [0, 32], sizes = [8, 32], strides = [1, 1]} : vector<8x96xf32> to vector<8x32xf32>
    %23 = arith.mulf %22, %10 : vector<8x32xf32>
    %24 = vector.extract_strided_slice %19 {offsets = [0, 0], sizes = [8, 32], strides = [1, 1]} : vector<8x96xf32> to vector<8x32xf32>
    %25 = arith.mulf %24, %21 : vector<8x32xf32>
    %26 = arith.addf %23, %25 : vector<8x32xf32>
    %27 = vector.extract_strided_slice %19 {offsets = [0, 64], sizes = [8, 32], strides = [1, 1]} : vector<8x96xf32> to vector<8x32xf32>
    %28 = math.tanh %26 : vector<8x32xf32>
    %29 = arith.mulf %27, %28 : vector<8x32xf32>
    %c0_8 = arith.constant 0 : index
    %c0_9 = arith.constant 0 : index
    %30 = vector.load %arg3[%c0_8, %c0_9] : memref<64x32xf32, #tpu.memory_space<vmem>>, vector<8x32xf32>
    tpu.vector_store %arg3[%c0_8, %c0_9], %29 {strides = array<i32>} : memref<64x32xf32, #tpu.memory_space<vmem>>, vector<8x32xf32>,
    %31 = vector.extract_strided_slice %7 {offsets = [8, 0], sizes = [8, 128], strides = [1, 1]} : vector<64x128xf32> to vector<8x128xf32>
    %cst_10 = arith.constant dense<0.000000e+00> : vector<8x128xf32>
    %32 = tpu.matmul %29, %8, %cst_10 {dimension_numbers = #tpu.dot_dimension_numbers<[1], [0], [0], [1], [0, 0, 1, 1], [], []>} : vector<8x32xf32>, vector<32x128xf32>, vector<8x128xf32> -> vector<8x128xf32>
    %33 = arith.addf %31, %32 : vector<8x128xf32>
    %34 = vector.extract_strided_slice %33 {offsets = [0, 0], sizes = [8, 96], strides = [1, 1]} : vector<8x128xf32> to vector<8x96xf32>
    %35 = arith.negf %34 : vector<8x96xf32>
    %36 = math.exp %35 : vector<8x96xf32>
    %cst_11 = arith.constant 1.000000e+00 : f32
    %37 = vector.broadcast %cst_11 : f32 to vector<8x96xf32>
    %38 = arith.addf %37, %36 : vector<8x96xf32>
    %39 = arith.divf %37, %38 : vector<8x96xf32>
    %40 = vector.extract_strided_slice %33 {offsets = [0, 96], sizes = [8, 32], strides = [1, 1]} : vector<8x128xf32> to vector<8x32xf32>
    %41 = math.tanh %40 : vector<8x32xf32>
    %42 = vector.extract_strided_slice %39 {offsets = [0, 32], sizes = [8, 32], strides = [1, 1]} : vector<8x96xf32> to vector<8x32xf32>
    %43 = arith.mulf %42, %26 : vector<8x32xf32>
    %44 = vector.extract_strided_slice %39 {offsets = [0, 0], sizes = [8, 32], strides = [1, 1]} : vector<8x96xf32> to vector<8x32xf32>
    %45 = arith.mulf %44, %41 : vector<8x32xf32>
    %46 = arith.addf %43, %45 : vector<8x32xf32>
    %47 = vector.extract_strided_slice %39 {offsets = [0, 64], sizes = [8, 32], strides = [1, 1]} : vector<8x96xf32> to vector<8x32xf32>
    %48 = math.tanh %46 : vector<8x32xf32>
    %49 = arith.mulf %47, %48 : vector<8x32xf32>
    %c8 = arith.constant 8 : index
    %c0_12 = arith.constant 0 : index
    %50 = vector.load %arg3[%c8, %c0_12] : memref<64x32xf32, #tpu.memory_space<vmem>>, vector<8x32xf32>
    tpu.vector_store %arg3[%c8, %c0_12], %49 {strides = array<i32>} : memref<64x32xf32, #tpu.memory_space<vmem>>, vector<8x32xf32>,
    %51 = vector.extract_strided_slice %7 {offsets = [16, 0], sizes = [8, 128], strides = [1, 1]} : vector<64x128xf32> to vector<8x128xf32>
    %cst_13 = arith.constant dense<0.000000e+00> : vector<8x128xf32>
    %52 = tpu.matmul %49, %8, %cst_13 {dimension_numbers = #tpu.dot_dimension_numbers<[1], [0], [0], [1], [0, 0, 1, 1], [], []>} : vector<8x32xf32>, vector<32x128xf32>, vector<8x128xf32> -> vector<8x128xf32>
    %53 = arith.addf %51, %52 : vector<8x128xf32>
    %54 = vector.extract_strided_slice %53 {offsets = [0, 0], sizes = [8, 96], strides = [1, 1]} : vector<8x128xf32> to vector<8x96xf32>
    %55 = arith.negf %54 : vector<8x96xf32>
    %56 = math.exp %55 : vector<8x96xf32>
    %cst_14 = arith.constant 1.000000e+00 : f32
    %57 = vector.broadcast %cst_14 : f32 to vector<8x96xf32>
    %58 = arith.addf %57, %56 : vector<8x96xf32>
    %59 = arith.divf %57, %58 : vector<8x96xf32>
    %60 = vector.extract_strided_slice %53 {offsets = [0, 96], sizes = [8, 32], strides = [1, 1]} : vector<8x128xf32> to vector<8x32xf32>
    %61 = math.tanh %60 : vector<8x32xf32>
    %62 = vector.extract_strided_slice %59 {offsets = [0, 32], sizes = [8, 32], strides = [1, 1]} : vector<8x96xf32> to vector<8x32xf32>
    %63 = arith.mulf %62, %46 : vector<8x32xf32>
    %64 = vector.extract_strided_slice %59 {offsets = [0, 0], sizes = [8, 32], strides = [1, 1]} : vector<8x96xf32> to vector<8x32xf32>
    %65 = arith.mulf %64, %61 : vector<8x32xf32>
    %66 = arith.addf %63, %65 : vector<8x32xf32>
    %67 = vector.extract_strided_slice %59 {offsets = [0, 64], sizes = [8, 32], strides = [1, 1]} : vector<8x96xf32> to vector<8x32xf32>
    %68 = math.tanh %66 : vector<8x32xf32>
    %69 = arith.mulf %67, %68 : vector<8x32xf32>
    %c16 = arith.constant 16 : index
    %c0_15 = arith.constant 0 : index
    %70 = vector.load %arg3[%c16, %c0_15] : memref<64x32xf32, #tpu.memory_space<vmem>>, vector<8x32xf32>
    tpu.vector_store %arg3[%c16, %c0_15], %69 {strides = array<i32>} : memref<64x32xf32, #tpu.memory_space<vmem>>, vector<8x32xf32>,
    %71 = vector.extract_strided_slice %7 {offsets = [24, 0], sizes = [8, 128], strides = [1, 1]} : vector<64x128xf32> to vector<8x128xf32>
    %cst_16 = arith.constant dense<0.000000e+00> : vector<8x128xf32>
    %72 = tpu.matmul %69, %8, %cst_16 {dimension_numbers = #tpu.dot_dimension_numbers<[1], [0], [0], [1], [0, 0, 1, 1], [], []>} : vector<8x32xf32>, vector<32x128xf32>, vector<8x128xf32> -> vector<8x128xf32>
    %73 = arith.addf %71, %72 : vector<8x128xf32>
    %74 = vector.extract_strided_slice %73 {offsets = [0, 0], sizes = [8, 96], strides = [1, 1]} : vector<8x128xf32> to vector<8x96xf32>
    %75 = arith.negf %74 : vector<8x96xf32>
    %76 = math.exp %75 : vector<8x96xf32>
    %cst_17 = arith.constant 1.000000e+00 : f32
    %77 = vector.broadcast %cst_17 : f32 to vector<8x96xf32>
    %78 = arith.addf %77, %76 : vector<8x96xf32>
    %79 = arith.divf %77, %78 : vector<8x96xf32>
    %80 = vector.extract_strided_slice %73 {offsets = [0, 96], sizes = [8, 32], strides = [1, 1]} : vector<8x128xf32> to vector<8x32xf32>
    %81 = math.tanh %80 : vector<8x32xf32>
    %82 = vector.extract_strided_slice %79 {offsets = [0, 32], sizes = [8, 32], strides = [1, 1]} : vector<8x96xf32> to vector<8x32xf32>
    %83 = arith.mulf %82, %66 : vector<8x32xf32>
    %84 = vector.extract_strided_slice %79 {offsets = [0, 0], sizes = [8, 32], strides = [1, 1]} : vector<8x96xf32> to vector<8x32xf32>
    %85 = arith.mulf %84, %81 : vector<8x32xf32>
    %86 = arith.addf %83, %85 : vector<8x32xf32>
    %87 = vector.extract_strided_slice %79 {offsets = [0, 64], sizes = [8, 32], strides = [1, 1]} : vector<8x96xf32> to vector<8x32xf32>
    %88 = math.tanh %86 : vector<8x32xf32>
    %89 = arith.mulf %87, %88 : vector<8x32xf32>
    %c24 = arith.constant 24 : index
    %c0_18 = arith.constant 0 : index
    %90 = vector.load %arg3[%c24, %c0_18] : memref<64x32xf32, #tpu.memory_space<vmem>>, vector<8x32xf32>
    tpu.vector_store %arg3[%c24, %c0_18], %89 {strides = array<i32>} : memref<64x32xf32, #tpu.memory_space<vmem>>, vector<8x32xf32>,
    %91 = vector.extract_strided_slice %7 {offsets = [32, 0], sizes = [8, 128], strides = [1, 1]} : vector<64x128xf32> to vector<8x128xf32>
    %cst_19 = arith.constant dense<0.000000e+00> : vector<8x128xf32>
    %92 = tpu.matmul %89, %8, %cst_19 {dimension_numbers = #tpu.dot_dimension_numbers<[1], [0], [0], [1], [0, 0, 1, 1], [], []>} : vector<8x32xf32>, vector<32x128xf32>, vector<8x128xf32> -> vector<8x128xf32>
    %93 = arith.addf %91, %92 : vector<8x128xf32>
    %94 = vector.extract_strided_slice %93 {offsets = [0, 0], sizes = [8, 96], strides = [1, 1]} : vector<8x128xf32> to vector<8x96xf32>
    %95 = arith.negf %94 : vector<8x96xf32>
    %96 = math.exp %95 : vector<8x96xf32>
    %cst_20 = arith.constant 1.000000e+00 : f32
    %97 = vector.broadcast %cst_20 : f32 to vector<8x96xf32>
    %98 = arith.addf %97, %96 : vector<8x96xf32>
    %99 = arith.divf %97, %98 : vector<8x96xf32>
    %100 = vector.extract_strided_slice %93 {offsets = [0, 96], sizes = [8, 32], strides = [1, 1]} : vector<8x128xf32> to vector<8x32xf32>
    %101 = math.tanh %100 : vector<8x32xf32>
    %102 = vector.extract_strided_slice %99 {offsets = [0, 32], sizes = [8, 32], strides = [1, 1]} : vector<8x96xf32> to vector<8x32xf32>
    %103 = arith.mulf %102, %86 : vector<8x32xf32>
    %104 = vector.extract_strided_slice %99 {offsets = [0, 0], sizes = [8, 32], strides = [1, 1]} : vector<8x96xf32> to vector<8x32xf32>
    %105 = arith.mulf %104, %101 : vector<8x32xf32>
    %106 = arith.addf %103, %105 : vector<8x32xf32>
    %107 = vector.extract_strided_slice %99 {offsets = [0, 64], sizes = [8, 32], strides = [1, 1]} : vector<8x96xf32> to vector<8x32xf32>
    %108 = math.tanh %106 : vector<8x32xf32>
    %109 = arith.mulf %107, %108 : vector<8x32xf32>
    %c32 = arith.constant 32 : index
    %c0_21 = arith.constant 0 : index
    %110 = vector.load %arg3[%c32, %c0_21] : memref<64x32xf32, #tpu.memory_space<vmem>>, vector<8x32xf32>
    tpu.vector_store %arg3[%c32, %c0_21], %109 {strides = array<i32>} : memref<64x32xf32, #tpu.memory_space<vmem>>, vector<8x32xf32>,
    %111 = vector.extract_strided_slice %7 {offsets = [40, 0], sizes = [8, 128], strides = [1, 1]} : vector<64x128xf32> to vector<8x128xf32>
    %cst_22 = arith.constant dense<0.000000e+00> : vector<8x128xf32>
    %112 = tpu.matmul %109, %8, %cst_22 {dimension_numbers = #tpu.dot_dimension_numbers<[1], [0], [0], [1], [0, 0, 1, 1], [], []>} : vector<8x32xf32>, vector<32x128xf32>, vector<8x128xf32> -> vector<8x128xf32>
    %113 = arith.addf %111, %112 : vector<8x128xf32>
    %114 = vector.extract_strided_slice %113 {offsets = [0, 0], sizes = [8, 96], strides = [1, 1]} : vector<8x128xf32> to vector<8x96xf32>
    %115 = arith.negf %114 : vector<8x96xf32>
    %116 = math.exp %115 : vector<8x96xf32>
    %cst_23 = arith.constant 1.000000e+00 : f32
    %117 = vector.broadcast %cst_23 : f32 to vector<8x96xf32>
    %118 = arith.addf %117, %116 : vector<8x96xf32>
    %119 = arith.divf %117, %118 : vector<8x96xf32>
    %120 = vector.extract_strided_slice %113 {offsets = [0, 96], sizes = [8, 32], strides = [1, 1]} : vector<8x128xf32> to vector<8x32xf32>
    %121 = math.tanh %120 : vector<8x32xf32>
    %122 = vector.extract_strided_slice %119 {offsets = [0, 32], sizes = [8, 32], strides = [1, 1]} : vector<8x96xf32> to vector<8x32xf32>
    %123 = arith.mulf %122, %106 : vector<8x32xf32>
    %124 = vector.extract_strided_slice %119 {offsets = [0, 0], sizes = [8, 32], strides = [1, 1]} : vector<8x96xf32> to vector<8x32xf32>
    %125 = arith.mulf %124, %121 : vector<8x32xf32>
    %126 = arith.addf %123, %125 : vector<8x32xf32>
    %127 = vector.extract_strided_slice %119 {offsets = [0, 64], sizes = [8, 32], strides = [1, 1]} : vector<8x96xf32> to vector<8x32xf32>
    %128 = math.tanh %126 : vector<8x32xf32>
    %129 = arith.mulf %127, %128 : vector<8x32xf32>
    %c40 = arith.constant 40 : index
    %c0_24 = arith.constant 0 : index
    %130 = vector.load %arg3[%c40, %c0_24] : memref<64x32xf32, #tpu.memory_space<vmem>>, vector<8x32xf32>
    tpu.vector_store %arg3[%c40, %c0_24], %129 {strides = array<i32>} : memref<64x32xf32, #tpu.memory_space<vmem>>, vector<8x32xf32>,
    %131 = vector.extract_strided_slice %7 {offsets = [48, 0], sizes = [8, 128], strides = [1, 1]} : vector<64x128xf32> to vector<8x128xf32>
    %cst_25 = arith.constant dense<0.000000e+00> : vector<8x128xf32>
    %132 = tpu.matmul %129, %8, %cst_25 {dimension_numbers = #tpu.dot_dimension_numbers<[1], [0], [0], [1], [0, 0, 1, 1], [], []>} : vector<8x32xf32>, vector<32x128xf32>, vector<8x128xf32> -> vector<8x128xf32>
    %133 = arith.addf %131, %132 : vector<8x128xf32>
    %134 = vector.extract_strided_slice %133 {offsets = [0, 0], sizes = [8, 96], strides = [1, 1]} : vector<8x128xf32> to vector<8x96xf32>
    %135 = arith.negf %134 : vector<8x96xf32>
    %136 = math.exp %135 : vector<8x96xf32>
    %cst_26 = arith.constant 1.000000e+00 : f32
    %137 = vector.broadcast %cst_26 : f32 to vector<8x96xf32>
    %138 = arith.addf %137, %136 : vector<8x96xf32>
    %139 = arith.divf %137, %138 : vector<8x96xf32>
    %140 = vector.extract_strided_slice %133 {offsets = [0, 96], sizes = [8, 32], strides = [1, 1]} : vector<8x128xf32> to vector<8x32xf32>
    %141 = math.tanh %140 : vector<8x32xf32>
    %142 = vector.extract_strided_slice %139 {offsets = [0, 32], sizes = [8, 32], strides = [1, 1]} : vector<8x96xf32> to vector<8x32xf32>
    %143 = arith.mulf %142, %126 : vector<8x32xf32>
    %144 = vector.extract_strided_slice %139 {offsets = [0, 0], sizes = [8, 32], strides = [1, 1]} : vector<8x96xf32> to vector<8x32xf32>
    %145 = arith.mulf %144, %141 : vector<8x32xf32>
    %146 = arith.addf %143, %145 : vector<8x32xf32>
    %147 = vector.extract_strided_slice %139 {offsets = [0, 64], sizes = [8, 32], strides = [1, 1]} : vector<8x96xf32> to vector<8x32xf32>
    %148 = math.tanh %146 : vector<8x32xf32>
    %149 = arith.mulf %147, %148 : vector<8x32xf32>
    %c48 = arith.constant 48 : index
    %c0_27 = arith.constant 0 : index
    %150 = vector.load %arg3[%c48, %c0_27] : memref<64x32xf32, #tpu.memory_space<vmem>>, vector<8x32xf32>
    tpu.vector_store %arg3[%c48, %c0_27], %149 {strides = array<i32>} : memref<64x32xf32, #tpu.memory_space<vmem>>, vector<8x32xf32>,
    %151 = vector.extract_strided_slice %7 {offsets = [56, 0], sizes = [8, 128], strides = [1, 1]} : vector<64x128xf32> to vector<8x128xf32>
    %cst_28 = arith.constant dense<0.000000e+00> : vector<8x128xf32>
    %152 = tpu.matmul %149, %8, %cst_28 {dimension_numbers = #tpu.dot_dimension_numbers<[1], [0], [0], [1], [0, 0, 1, 1], [], []>} : vector<8x32xf32>, vector<32x128xf32>, vector<8x128xf32> -> vector<8x128xf32>
    %153 = arith.addf %151, %152 : vector<8x128xf32>
    %154 = vector.extract_strided_slice %153 {offsets = [0, 0], sizes = [8, 96], strides = [1, 1]} : vector<8x128xf32> to vector<8x96xf32>
    %155 = arith.negf %154 : vector<8x96xf32>
    %156 = math.exp %155 : vector<8x96xf32>
    %cst_29 = arith.constant 1.000000e+00 : f32
    %157 = vector.broadcast %cst_29 : f32 to vector<8x96xf32>
    %158 = arith.addf %157, %156 : vector<8x96xf32>
    %159 = arith.divf %157, %158 : vector<8x96xf32>
    %160 = vector.extract_strided_slice %153 {offsets = [0, 96], sizes = [8, 32], strides = [1, 1]} : vector<8x128xf32> to vector<8x32xf32>
    %161 = math.tanh %160 : vector<8x32xf32>
    %162 = vector.extract_strided_slice %159 {offsets = [0, 32], sizes = [8, 32], strides = [1, 1]} : vector<8x96xf32> to vector<8x32xf32>
    %163 = arith.mulf %162, %146 : vector<8x32xf32>
    %164 = vector.extract_strided_slice %159 {offsets = [0, 0], sizes = [8, 32], strides = [1, 1]} : vector<8x96xf32> to vector<8x32xf32>
    %165 = arith.mulf %164, %161 : vector<8x32xf32>
    %166 = arith.addf %163, %165 : vector<8x32xf32>
    %167 = vector.extract_strided_slice %159 {offsets = [0, 64], sizes = [8, 32], strides = [1, 1]} : vector<8x96xf32> to vector<8x32xf32>
    %168 = math.tanh %166 : vector<8x32xf32>
    %169 = arith.mulf %167, %168 : vector<8x32xf32>
    %c56_30 = arith.constant 56 : index
    %c0_31 = arith.constant 0 : index
    %170 = vector.load %arg3[%c56_30, %c0_31] : memref<64x32xf32, #tpu.memory_space<vmem>>, vector<8x32xf32>
    tpu.vector_store %arg3[%c56_30, %c0_31], %169 {strides = array<i32>} : memref<64x32xf32, #tpu.memory_space<vmem>>, vector<8x32xf32>,
    %c0_32 = arith.constant 0 : index
    %c0_33 = arith.constant 0 : index
    %171 = vector.load %arg3[%c0_32, %c0_33] : memref<64x32xf32, #tpu.memory_space<vmem>>, vector<64x32xf32>
    %c88 = arith.constant 88 : index
    %c32_34 = arith.constant 32 : index
    %172 = vector.load %arg1[%c88, %c32_34] : memref<160x128xf32, #tpu.memory_space<vmem>>, vector<32x64xf32>
    %cst_35 = arith.constant dense<0.000000e+00> : vector<64x64xf32>
    %173 = tpu.matmul %171, %172, %cst_35 {dimension_numbers = #tpu.dot_dimension_numbers<[1], [0], [0], [1], [0, 0, 1, 1], [], []>} : vector<64x32xf32>, vector<32x64xf32>, vector<64x64xf32> -> vector<64x64xf32>
    %c88_36 = arith.constant 88 : index
    %c0_37 = arith.constant 0 : index
    %174 = vector.load %arg1[%c88_36, %c0_37] : memref<160x128xf32, #tpu.memory_space<vmem>>, vector<32x32xf32>
    %cst_38 = arith.constant dense<0.000000e+00> : vector<8x32xf32>
    %175 = tpu.matmul %169, %174, %cst_38 {dimension_numbers = #tpu.dot_dimension_numbers<[1], [0], [0], [1], [0, 0, 1, 1], [], []>} : vector<8x32xf32>, vector<32x32xf32>, vector<8x32xf32> -> vector<8x32xf32>
    %176 = vector.extract_strided_slice %173 {offsets = [0, 0], sizes = [64, 32], strides = [1, 1]} : vector<64x64xf32> to vector<64x32xf32>
    %177 = tpu.transpose %176, [1, 0] : vector<64x32xf32> -> vector<32x64xf32>
    %178 = tpu.iota {dimensions = array<i32: 1>} : vector<8x64xi32>
    %c7_i32 = arith.constant 7 : i32
    %179 = vector.broadcast %c7_i32 : i32 to vector<8x64xi32>
    %180 = arith.andi %178, %179 : vector<8x64xi32>
    %181 = tpu.iota {dimensions = array<i32: 0>} : vector<8x64xi32>
    %182 = arith.cmpi eq, %180, %181 : vector<8x64xi32>
    %cst_39 = arith.constant 0.000000e+00 : f32
    %cst_40 = arith.constant -1.000000e+09 : f32
    %183 = vector.broadcast %cst_39 : f32 to vector<8x64xf32>
    %184 = vector.broadcast %cst_40 : f32 to vector<8x64xf32>
    %185 = arith.select %182, %183, %184 : vector<8x64xi1>, vector<8x64xf32>
    %186 = vector.extract_strided_slice %175 {offsets = [0, 0], sizes = [8, 16], strides = [1, 1]} : vector<8x32xf32> to vector<8x16xf32>
    %187 = vector.extract_strided_slice %177 {offsets = [0, 0], sizes = [16, 64], strides = [1, 1]} : vector<32x64xf32> to vector<16x64xf32>
    %cst_41 = arith.constant dense<0.000000e+00> : vector<8x64xf32>
    %188 = tpu.matmul %186, %187, %cst_41 {dimension_numbers = #tpu.dot_dimension_numbers<[1], [0], [0], [1], [0, 0, 1, 1], [], []>} : vector<8x16xf32>, vector<16x64xf32>, vector<8x64xf32> -> vector<8x64xf32>
    %cst_42 = arith.constant 2.500000e-01 : f32
    %189 = vector.broadcast %cst_42 : f32 to vector<8x64xf32>
    %190 = arith.mulf %188, %189 : vector<8x64xf32>
    %191 = arith.addf %190, %185 : vector<8x64xf32>
    %192 = math.exp %191 : vector<8x64xf32>
    %cst_43 = arith.constant dense<0.000000e+00> : vector<8xf32>
    %193 = vector.multi_reduction <add>, %192, %cst_43 [1] : vector<8x64xf32> to vector<8xf32>
    %194 = vector.shape_cast %193 : vector<8xf32> to vector<8x1xf32>
    %195 = tpu.reciprocal %194 {approx = true} : vector<8x1xf32> -> vector<8x1xf32>
    %196 = vector.broadcast %195 : vector<8x1xf32> to vector<8x64xf32>
    %197 = arith.mulf %192, %196 : vector<8x64xf32>
    %198 = vector.extract_strided_slice %173 {offsets = [0, 32], sizes = [64, 16], strides = [1, 1]} : vector<64x64xf32> to vector<64x16xf32>
    %cst_44 = arith.constant dense<0.000000e+00> : vector<8x16xf32>
    %199 = tpu.matmul %197, %198, %cst_44 {dimension_numbers = #tpu.dot_dimension_numbers<[1], [0], [0], [1], [0, 0, 1, 1], [], []>} : vector<8x64xf32>, vector<64x16xf32>, vector<8x16xf32> -> vector<8x16xf32>
    %200 = vector.extract_strided_slice %175 {offsets = [0, 16], sizes = [8, 16], strides = [1, 1]} : vector<8x32xf32> to vector<8x16xf32>
    %201 = vector.extract_strided_slice %177 {offsets = [16, 0], sizes = [16, 64], strides = [1, 1]} : vector<32x64xf32> to vector<16x64xf32>
    %cst_45 = arith.constant dense<0.000000e+00> : vector<8x64xf32>
    %202 = tpu.matmul %200, %201, %cst_45 {dimension_numbers = #tpu.dot_dimension_numbers<[1], [0], [0], [1], [0, 0, 1, 1], [], []>} : vector<8x16xf32>, vector<16x64xf32>, vector<8x64xf32> -> vector<8x64xf32>
    %cst_46 = arith.constant 2.500000e-01 : f32
    %203 = vector.broadcast %cst_46 : f32 to vector<8x64xf32>
    %204 = arith.mulf %202, %203 : vector<8x64xf32>
    %205 = arith.addf %204, %185 : vector<8x64xf32>
    %206 = math.exp %205 : vector<8x64xf32>
    %cst_47 = arith.constant dense<0.000000e+00> : vector<8xf32>
    %207 = vector.multi_reduction <add>, %206, %cst_47 [1] : vector<8x64xf32> to vector<8xf32>
    %208 = vector.shape_cast %207 : vector<8xf32> to vector<8x1xf32>
    %209 = tpu.reciprocal %208 {approx = true} : vector<8x1xf32> -> vector<8x1xf32>
    %210 = vector.broadcast %209 : vector<8x1xf32> to vector<8x64xf32>
    %211 = arith.mulf %206, %210 : vector<8x64xf32>
    %212 = vector.extract_strided_slice %173 {offsets = [0, 48], sizes = [64, 16], strides = [1, 1]} : vector<64x64xf32> to vector<64x16xf32>
    %cst_48 = arith.constant dense<0.000000e+00> : vector<8x16xf32>
    %213 = tpu.matmul %211, %212, %cst_48 {dimension_numbers = #tpu.dot_dimension_numbers<[1], [0], [0], [1], [0, 0, 1, 1], [], []>} : vector<8x64xf32>, vector<64x16xf32>, vector<8x16xf32> -> vector<8x16xf32>
    %214 = tpu.concatenate %199, %213 in 1 : vector<8x16xf32>, vector<8x16xf32> -> vector<8x32xf32>
    %215 = vector.extract_strided_slice %214 {offsets = [0, 0], sizes = [2, 32], strides = [1, 1]} : vector<8x32xf32> to vector<2x32xf32>
    %216 = vector.extract_strided_slice %214 {offsets = [2, 0], sizes = [2, 32], strides = [1, 1]} : vector<8x32xf32> to vector<2x32xf32>
    %217 = arith.subf %215, %216 : vector<2x32xf32>
    %218 = math.absf %217 : vector<2x32xf32>
    %219 = arith.mulf %215, %216 : vector<2x32xf32>
    %c88_49 = arith.constant 88 : index
    %c96 = arith.constant 96 : index
    %220 = vector.load %arg1[%c88_49, %c96] : memref<160x128xf32, #tpu.memory_space<vmem>>, vector<32x32xf32>
    %cst_50 = arith.constant dense<0.000000e+00> : vector<2x32xf32>
    %221 = tpu.matmul %218, %220, %cst_50 {dimension_numbers = #tpu.dot_dimension_numbers<[1], [0], [0], [1], [0, 0, 1, 1], [], []>} : vector<2x32xf32>, vector<32x32xf32>, vector<2x32xf32> -> vector<2x32xf32>
    %c120 = arith.constant 120 : index
    %c0_51 = arith.constant 0 : index
    %222 = vector.load %arg1[%c120, %c0_51] : memref<160x128xf32, #tpu.memory_space<vmem>>, vector<32x32xf32>
    %cst_52 = arith.constant dense<0.000000e+00> : vector<2x32xf32>
    %223 = tpu.matmul %219, %222, %cst_52 {dimension_numbers = #tpu.dot_dimension_numbers<[1], [0], [0], [1], [0, 0, 1, 1], [], []>} : vector<2x32xf32>, vector<32x32xf32>, vector<2x32xf32> -> vector<2x32xf32>
    %224 = arith.addf %221, %223 : vector<2x32xf32>
    %c152 = arith.constant 152 : index
    %c0_53 = arith.constant 0 : index
    %225 = vector.load %arg1[%c152, %c0_53] : memref<160x128xf32, #tpu.memory_space<vmem>>, vector<1x32xf32>
    %226 = vector.broadcast %225 : vector<1x32xf32> to vector<2x32xf32>
    %227 = arith.addf %224, %226 : vector<2x32xf32>
    %cst_54 = arith.constant 0.000000e+00 : f32
    %228 = vector.broadcast %cst_54 : f32 to vector<2x32xf32>
    %229 = arith.maximumf %227, %228 : vector<2x32xf32>
    %c120_55 = arith.constant 120 : index
    %c32_56 = arith.constant 32 : index
    %230 = vector.load %arg1[%c120_55, %c32_56] : memref<160x128xf32, #tpu.memory_space<vmem>>, vector<32x1xf32>
    %cst_57 = arith.constant dense<0.000000e+00> : vector<2x1xf32>
    %231 = tpu.matmul %229, %230, %cst_57 {dimension_numbers = #tpu.dot_dimension_numbers<[1], [0], [0], [1], [0, 0, 1, 1], [], []>} : vector<2x32xf32>, vector<32x1xf32>, vector<2x1xf32> -> vector<2x1xf32>
    %c152_58 = arith.constant 152 : index
    %c32_59 = arith.constant 32 : index
    %232 = vector.load %arg1[%c152_58, %c32_59] : memref<160x128xf32, #tpu.memory_space<vmem>>, vector<1x1xf32>
    %233 = vector.broadcast %232 : vector<1x1xf32> to vector<2x1xf32>
    %234 = arith.addf %231, %233 : vector<2x1xf32>
    %235 = arith.negf %234 : vector<2x1xf32>
    %236 = math.exp %235 : vector<2x1xf32>
    %cst_60 = arith.constant 1.000000e+00 : f32
    %237 = vector.broadcast %cst_60 : f32 to vector<2x1xf32>
    %238 = arith.addf %237, %236 : vector<2x1xf32>
    %239 = arith.divf %237, %238 : vector<2x1xf32>
    %c0_61 = arith.constant 0 : index
    %c0_62 = arith.constant 0 : index
    %240 = vector.load %arg2[%c0_61, %c0_62] : memref<2x1xf32, #tpu.memory_space<vmem>>, vector<2x1xf32>
    tpu.vector_store %arg2[%c0_61, %c0_62], %239 {strides = array<i32>} : memref<2x1xf32, #tpu.memory_space<vmem>>, vector<2x1xf32>,
    return
  }
}

</mosaic_0001>

<llo_original>
// kernel: model_forward.1
$region0: #{model_forward.1}
  #allocation0 [shape = 'u32[]', space=smem, size = 0x4, offset = 0x4, fixed_abs, tag = 'smem constant byte address 0x4 - core index']
  #allocation1 [shape = 'u32[144,128]{1,0:T(1,128)}', space=vmem, size = 0x12000, scoped, tag = 'internal scratch']
  #allocation2 [shape = 'f32[64,32]{1,0:T(8,128)}', space=vmem, size = 0x8000, scoped, tag = 'scratch operand']
  %s0 = inlined_call_operand.vmem [shape: s32[64,1], index: 0, kind: input, shape index: {}]
  %s1 = inlined_call_operand.hbm [shape: f32[160,128], index: 1, kind: input, shape index: {}]
  %s2 = inlined_call_operand.vmem [shape: f32[2,1], index: 2, kind: output, shape index: {}]
  %s3 = sld [smem:[#allocation0]]
  $region22: #{model_forward.1} parent=0
    _
  %s5 = ssub.s32 1, %s3
  %s6 = scalar_select 0, %s5, %s3
  $region1: #{model_forward.1} parent=0
    #allocation3 [shape = 'u8[81920]{0}', space=vmem, size = 0x14000, scoped, tag = 'input window, operand 1, single buffered']
    #allocation4 [shape = 's32[1]{0}', space=sflag, size = 0x4, scoped, tag = 'scoped memory for model_forward.1']
    %7 = vsyncpa [#allocation4], 0
    // Predicated region
    $region2: #{model_forward.1} parent=1 // pred_check
      _
    $region3: #{model_forward.1} parent=1 // pred_check_branch
      %9 = sbr.rel (0) target = $region5
    $region4: #{model_forward.1} parent=1 // pred_region
      _
    $region5: #{model_forward.1} parent=1 // pred_fallthru
      _
    // Predicated region
    $region6: #{model_forward.1} parent=1 // pred_check
      _
    $region7: #{model_forward.1} parent=1 // pred_check_branch
      %11 = sbr.rel (0) target = $region9
    $region8: #{model_forward.1} parent=1 // pred_region
      %s13 = ssub.s32 2560, 2560
      %14 = vsyncadd [#allocation4], %s13
      %s15 = sshll.u32 [#allocation3], 4
      %s16 = int_to_ptr.vmem [resolvable:$true] %s15
      %21 = dma.hbm_to_vmem [thread:$0]  %s1, 2560, %s16, [#allocation4], 128, 128, 8
    $region9: #{model_forward.1} parent=1 // pred_fallthru
      _
    // Predicated region
    $region10: #{model_forward.1} parent=1 // pred_check
      _
    $region11: #{model_forward.1} parent=1 // pred_check_branch
      %23 = sbr.rel (0) target = $region13
    $region12: #{model_forward.1} parent=1 // pred_region
      %24 = dma.done [#allocation4], 2560
    $region13: #{model_forward.1} parent=1 // pred_fallthru
      _
    %v25 = vld [vmem:[%s0] sm:$0xff]
    %v26 = vld [vmem:[%s0 + $0x8] sm:$0xff]
    %v27 = vld [vmem:[%s0 + $0x10] sm:$0xff]
    %v28 = vld [vmem:[%s0 + $0x18] sm:$0xff]
    %v29 = vld [vmem:[%s0 + $0x20] sm:$0xff]
    %v30 = vld [vmem:[%s0 + $0x28] sm:$0xff]
    %v31 = vld [vmem:[%s0 + $0x30] sm:$0xff]
    %v32 = vld [vmem:[%s0 + $0x38] sm:$0xff]
    %v33 = vlaneseq
    %v34 = vand.u32 %v33, 127
    %35 = vset.pattern.permute.xlu0 0
    %36 = vperm.xlu0 %35, %v25
    %v37 = vpop.permute.xlu0 %36
    %38 = vset.pattern.permute.xlu0 0
    %39 = vperm.xlu0 %38, %v26
    %v40 = vpop.permute.xlu0 %39
    %41 = vset.pattern.permute.xlu0 0
    %42 = vperm.xlu0 %41, %v27
    %v43 = vpop.permute.xlu0 %42
    %44 = vset.pattern.permute.xlu0 0
    %45 = vperm.xlu0 %44, %v28
    %v46 = vpop.permute.xlu0 %45
    %47 = vset.pattern.permute.xlu0 0
    %48 = vperm.xlu0 %47, %v29
    %v49 = vpop.permute.xlu0 %48
    %50 = vset.pattern.permute.xlu0 0
    %51 = vperm.xlu0 %50, %v30
    %v52 = vpop.permute.xlu0 %51
    %53 = vset.pattern.permute.xlu0 0
    %54 = vperm.xlu0 %53, %v31
    %v55 = vpop.permute.xlu0 %54
    %56 = vset.pattern.permute.xlu0 0
    %57 = vperm.xlu0 %56, %v32
    %v58 = vpop.permute.xlu0 %57
    %vm59 = vcmp.eq.s32.totalorder %v37, %v34
    %vm60 = vcmp.eq.s32.totalorder %v40, %v34
    %vm61 = vcmp.eq.s32.totalorder %v43, %v34
    %vm62 = vcmp.eq.s32.totalorder %v46, %v34
    %vm63 = vcmp.eq.s32.totalorder %v49, %v34
    %vm64 = vcmp.eq.s32.totalorder %v52, %v34
    %vm65 = vcmp.eq.s32.totalorder %v55, %v34
    %vm66 = vcmp.eq.s32.totalorder %v58, %v34
    %v67 = vsel %vm59, 1, 0
    %v68 = vsel %vm60, 1, 0
    %v69 = vsel %vm61, 1, 0
    %v70 = vsel %vm62, 1, 0
    %v71 = vsel %vm63, 1, 0
    %v72 = vsel %vm64, 1, 0
    %v73 = vsel %vm65, 1, 0
    %v74 = vsel %vm66, 1, 0
    %v75 = vcvt.s32.f32 %v67
    %v76 = vcvt.s32.f32 %v68
    %v77 = vcvt.s32.f32 %v69
    %v78 = vcvt.s32.f32 %v70
    %v79 = vcvt.s32.f32 %v71
    %v80 = vcvt.s32.f32 %v72
    %v81 = vcvt.s32.f32 %v73
    %v82 = vcvt.s32.f32 %v74
    %v83 = vld [vmem:[#allocation3] sm:$0xff]
    %v84 = vld [vmem:[#allocation3 + $0x8] sm:$0xff]
    %v85 = vld [vmem:[#allocation3 + $0x10] sm:$0xff]
    %v86 = vld [vmem:[#allocation3 + $0x18] sm:$0xff]
    %v87 = vld [vmem:[#allocation3 + $0x20] sm:$0xff]
    %v88 = vld [vmem:[#allocation3 + $0x28] sm:$0xff]
    %v89 = vld [vmem:[#allocation3 + $0x30] sm:$0xff]
    %vm90 = vcmask 457728
    %v92 = vsel %vm90, %v75, 0
    %v95 = vsel %vm90, %v76, 0
    %v98 = vsel %vm90, %v77, 0
    %v101 = vsel %vm90, %v78, 0
    %v104 = vsel %vm90, %v79, 0
    %v107 = vsel %vm90, %v80, 0
    %v110 = vsel %vm90, %v81, 0
    %v113 = vsel %vm90, %v82, 0
    %115 = vmatprep.subr.mxu0 0.0
    %116 = vmatpush1.msra.mxu0 %v83
    %117 = vmatprep.subr.mxu0 0.0
    %118 = vmatpush1.msra.mxu0 %v84
    %119 = vmatprep.subr.mxu0 0.0
    %120 = vmatpush1.msra.mxu0 %v85
    %121 = vmatprep.subr.mxu0 0.0
    %122 = vmatpush1.msra.mxu0 %v86
    %123 = vmatprep.subr.mxu0 0.0
    %124 = vmatpush1.msra.mxu0 %v87
    %125 = vmatprep.subr.mxu0 0.0
    %126 = vmatpush1.msra.mxu0 %v88
    %127 = vmatprep.subr.mxu0 0.0
    %128 = vmatpush1.msra.mxu0 %v89
    %129 = vmatprep.subr.mxu0 0.0
    %130 = vmatpush1.msra.mxu0 0.0
    %131 = vmatprep.subr.mxu0 0.0
    %132 = vmatpush1.msra.mxu0 0.0
    %133 = vmatprep.subr.mxu0 0.0
    %134 = vmatpush1.msra.mxu0 0.0
    %135 = vmatprep.subr.mxu0 0.0
    %136 = vmatpush1.msra.mxu0 0.0
    %137 = vmatprep.subr.mxu0 0.0
    %138 = vmatpush1.msra.mxu0 0.0
    %139 = vmatprep.subr.mxu0 0.0
    %140 = vmatpush1.msra.mxu0 0.0
    %141 = vmatprep.subr.mxu0 0.0
    %142 = vmatpush1.msra.mxu0 0.0
    %143 = vmatprep.subr.mxu0 0.0
    %144 = vmatpush1.msra.mxu0 0.0
    %145 = vmatprep.subr.mxu0 0.0
    %146 = vmatpush1.msra.mxu0 0.0
    %147 = vmatprep.subr.mxu0 0.0
    %148 = vmatpush1.msra.mxu0 0.0
    %149 = vmatprep.subr.mxu0 0.0
    %150 = vmatpush1.msra.mxu0 0.0
    %151 = vmatprep.subr.mxu0 0.0
    %152 = vmatpush1.msra.mxu0 0.0
    %153 = vmatprep.subr.mxu0 0.0
    %154 = vmatpush1.msra.mxu0 0.0
    %155 = vmatprep.subr.mxu0 0.0
    %156 = vmatpush1.msra.mxu0 0.0
    %157 = vmatprep.subr.mxu0 0.0
    %158 = vmatpush1.msra.mxu0 0.0
    %159 = vmatprep.subr.mxu0 0.0
    %160 = vmatpush1.msra.mxu0 0.0
    %161 = vmatprep.subr.mxu0 0.0
    %162 = vmatpush1.msra.mxu0 0.0
    %163 = vmatprep.subr.mxu0 0.0
    %164 = vmatpush1.msra.mxu0 0.0
    %165 = vmatprep.subr.mxu0 0.0
    %166 = vmatpush1.msra.mxu0 0.0
    %167 = vmatprep.subr.mxu0 0.0
    %168 = vmatpush1.msra.mxu0 0.0
    %169 = vmatprep.subr.mxu0 0.0
    %170 = vmatpush1.msra.mxu0 0.0
    %171 = vmatprep.subr.mxu0 0.0
    %172 = vmatpush1.msra.mxu0 0.0
    %173 = vmatprep.subr.mxu0 0.0
    %174 = vmatpush1.msra.mxu0 0.0
    %175 = vmatprep.subr.mxu0 0.0
    %176 = vmatpush1.msra.mxu0 0.0
    %177 = vmatprep.subr.mxu0 0.0
    %178 = vmatpush1.msra.mxu0 0.0
    %179 = vmatprep.mubr.f32.mxu0 0.0
    %180 = vmatmul.mubr.f32.gmra.mrb[0].mxu0 %v92
    %v181 = vpop.f32.mrb[0].mxu0
    %v182 = vadd.f32 0.0, %v181
    %v183 = vpop.f32.mrb[0].mxu0
    %184 = vmatprep.mubr.f32.mxu0 0.0
    %185 = vmatmul.mubr.f32.gmra.mrb[0].mxu0 %v95
    %v186 = vpop.f32.mrb[0].mxu0
    %v187 = vadd.f32 0.0, %v186
    %v188 = vpop.f32.mrb[0].mxu0
    %189 = vmatprep.mubr.f32.mxu0 0.0
    %190 = vmatmul.mubr.f32.gmra.mrb[0].mxu0 %v98
    %v191 = vpop.f32.mrb[0].mxu0
    %v192 = vadd.f32 0.0, %v191
    %v193 = vpop.f32.mrb[0].mxu0
    %194 = vmatprep.mubr.f32.mxu0 0.0
    %195 = vmatmul.mubr.f32.gmra.mrb[0].mxu0 %v101
    %v196 = vpop.f32.mrb[0].mxu0
    %v197 = vadd.f32 0.0, %v196
    %v198 = vpop.f32.mrb[0].mxu0
    %199 = vmatprep.mubr.f32.mxu0 0.0
    %200 = vmatmul.mubr.f32.gmra.mrb[0].mxu0 %v104
    %v201 = vpop.f32.mrb[0].mxu0
    %v202 = vadd.f32 0.0, %v201
    %v203 = vpop.f32.mrb[0].mxu0
    %204 = vmatprep.mubr.f32.mxu0 0.0
    %205 = vmatmul.mubr.f32.gmra.mrb[0].mxu0 %v107
    %v206 = vpop.f32.mrb[0].mxu0
    %v207 = vadd.f32 0.0, %v206
    %v208 = vpop.f32.mrb[0].mxu0
    %209 = vmatprep.mubr.f32.mxu0 0.0
    %210 = vmatmul.mubr.f32.gmra.mrb[0].mxu0 %v110
    %v211 = vpop.f32.mrb[0].mxu0
    %v212 = vadd.f32 0.0, %v211
    %v213 = vpop.f32.mrb[0].mxu0
    %214 = vmatprep.mubr.f32.mxu0 0.0
    %215 = vmatmul.mubr.f32.gmra.mrb[0].mxu0 %v113
    %v216 = vpop.f32.mrb[0].mxu0
    %v217 = vadd.f32 0.0, %v216
    %v218 = vpop.f32.mrb[0].mxu0
    %219 = vdwg.mxu0
    %v220 = vld [vmem:[#allocation3 + $0x38] sm:$0xff]
    %v221 = vld [vmem:[#allocation3 + $0x40] sm:$0xff]
    %v222 = vld [vmem:[#allocation3 + $0x48] sm:$0xff]
    %v223 = vld [vmem:[#allocation3 + $0x50] sm:$0xff]
    %vm224 = vcmask 261120
    %v226 = vsel %vm224, 0.0, 0
    %228 = vmatprep.subr.mxu0 0.0
    %229 = vmatpush1.msra.mxu0 %v220
    %230 = vmatprep.subr.mxu0 0.0
    %231 = vmatpush1.msra.mxu0 %v221
    %232 = vmatprep.subr.mxu0 0.0
    %233 = vmatpush1.msra.mxu0 %v222
    %234 = vmatprep.subr.mxu0 0.0
    %235 = vmatpush1.msra.mxu0 %v223
    %236 = vmatprep.subr.mxu0 0.0
    %237 = vmatpush1.msra.mxu0 0.0
    %238 = vmatprep.subr.mxu0 0.0
    %239 = vmatpush1.msra.mxu0 0.0
    %240 = vmatprep.subr.mxu0 0.0
    %241 = vmatpush1.msra.mxu0 0.0
    %242 = vmatprep.subr.mxu0 0.0
    %243 = vmatpush1.msra.mxu0 0.0
    %244 = vmatprep.subr.mxu0 0.0
    %245 = vmatpush1.msra.mxu0 0.0
    %246 = vmatprep.subr.mxu0 0.0
    %247 = vmatpush1.msra.mxu0 0.0
    %248 = vmatprep.subr.mxu0 0.0
    %249 = vmatpush1.msra.mxu0 0.0
    %250 = vmatprep.subr.mxu0 0.0
    %251 = vmatpush1.msra.mxu0 0.0
    %252 = vmatprep.subr.mxu0 0.0
    %253 = vmatpush1.msra.mxu0 0.0
    %254 = vmatprep.subr.mxu0 0.0
    %255 = vmatpush1.msra.mxu0 0.0
    %256 = vmatprep.subr.mxu0 0.0
    %257 = vmatpush1.msra.mxu0 0.0
    %258 = vmatprep.subr.mxu0 0.0
    %259 = vmatpush1.msra.mxu0 0.0
    %260 = vmatprep.subr.mxu0 0.0
    %261 = vmatpush1.msra.mxu0 0.0
    %262 = vmatprep.subr.mxu0 0.0
    %263 = vmatpush1.msra.mxu0 0.0
    %264 = vmatprep.subr.mxu0 0.0
    %265 = vmatpush1.msra.mxu0 0.0
    %266 = vmatprep.subr.mxu0 0.0
    %267 = vmatpush1.msra.mxu0 0.0
    %268 = vmatprep.subr.mxu0 0.0
    %269 = vmatpush1.msra.mxu0 0.0
    %270 = vmatprep.subr.mxu0 0.0
    %271 = vmatpush1.msra.mxu0 0.0
    %272 = vmatprep.subr.mxu0 0.0
    %273 = vmatpush1.msra.mxu0 0.0
    %274 = vmatprep.subr.mxu0 0.0
    %275 = vmatpush1.msra.mxu0 0.0
    %276 = vmatprep.subr.mxu0 0.0
    %277 = vmatpush1.msra.mxu0 0.0
    %278 = vmatprep.subr.mxu0 0.0
    %279 = vmatpush1.msra.mxu0 0.0
    %280 = vmatprep.subr.mxu0 0.0
    %281 = vmatpush1.msra.mxu0 0.0
    %282 = vmatprep.subr.mxu0 0.0
    %283 = vmatpush1.msra.mxu0 0.0
    %284 = vmatprep.subr.mxu0 0.0
    %285 = vmatpush1.msra.mxu0 0.0
    %286 = vmatprep.subr.mxu0 0.0
    %287 = vmatpush1.msra.mxu0 0.0
    %288 = vmatprep.subr.mxu0 0.0
    %289 = vmatpush1.msra.mxu0 0.0
    %290 = vmatprep.subr.mxu0 0.0
    %291 = vmatpush1.msra.mxu0 0.0
    %292 = vmatprep.mubr.f32.mxu0 0.0
    %293 = vmatmul.mubr.f32.gmra.mrb[0].mxu0 %v226
    %v294 = vpop.f32.mrb[0].mxu0
    %v295 = vadd.f32 0.0, %v294
    %v296 = vpop.f32.mrb[0].mxu0
    %297 = vdwg.mxu0
    %v298 = vadd.f32 %v182, %v295
    %v299 = vxor.u32 %v298, 2147483648
    %v300 = vmul.f32 %v299, 1.442695
    %v301 = vpow.pop %v300
    %v302 = vadd.f32 %v301, 1.0
    %v303 = vrcp.pop %v302
    %v304 = vmul.f32 1.0, %v303
    %v305 = vtanh.pop %v298
    %v306 = vmul.f32 %v304, 0.0
    %308 = vrot.lane.b32.xlu0 %v305, 32
    %v309 = vpop.permute.xlu0 %308
    %v311 = vmul.f32 %v304, %v309
    %313 = vrot.lane.b32.xlu0 %v311, 32
    %v314 = vpop.permute.xlu0 %313
    %v316 = vadd.f32 %v306, %v314
    %v317 = vtanh.pop %v316
    %319 = vrot.lane.b32.xlu0 %v317, 32
    %v320 = vpop.permute.xlu0 %319
    %v322 = vmul.f32 %v304, %v320
    %324 = vrot.lane.b32.xlu0 %v322, 64
    %v325 = vpop.permute.xlu0 %324
    %327 = vst.msk [vmem:[#allocation2] sm:$0xff] %vm224, %v325
    %v328 = vsel %vm224, %v325, 0
    %330 = vmatprep.subr.mxu0 0.0
    %331 = vmatpush1.msra.mxu0 %v220
    %332 = vmatprep.subr.mxu0 0.0
    %333 = vmatpush1.msra.mxu0 %v221
    %334 = vmatprep.subr.mxu0 0.0
    %335 = vmatpush1.msra.mxu0 %v222
    %336 = vmatprep.subr.mxu0 0.0
    %337 = vmatpush1.msra.mxu0 %v223
    %338 = vmatprep.subr.mxu0 0.0
    %339 = vmatpush1.msra.mxu0 0.0
    %340 = vmatprep.subr.mxu0 0.0
    %341 = vmatpush1.msra.mxu0 0.0
    %342 = vmatprep.subr.mxu0 0.0
    %343 = vmatpush1.msra.mxu0 0.0
    %344 = vmatprep.subr.mxu0 0.0
    %345 = vmatpush1.msra.mxu0 0.0
    %346 = vmatprep.subr.mxu0 0.0
    %347 = vmatpush1.msra.mxu0 0.0
    %348 = vmatprep.subr.mxu0 0.0
    %349 = vmatpush1.msra.mxu0 0.0
    %350 = vmatprep.subr.mxu0 0.0
    %351 = vmatpush1.msra.mxu0 0.0
    %352 = vmatprep.subr.mxu0 0.0
    %353 = vmatpush1.msra.mxu0 0.0
    %354 = vmatprep.subr.mxu0 0.0
    %355 = vmatpush1.msra.mxu0 0.0
    %356 = vmatprep.subr.mxu0 0.0
    %357 = vmatpush1.msra.mxu0 0.0
    %358 = vmatprep.subr.mxu0 0.0
    %359 = vmatpush1.msra.mxu0 0.0
    %360 = vmatprep.subr.mxu0 0.0
    %361 = vmatpush1.msra.mxu0 0.0
    %362 = vmatprep.subr.mxu0 0.0
    %363 = vmatpush1.msra.mxu0 0.0
    %364 = vmatprep.subr.mxu0 0.0
    %365 = vmatpush1.msra.mxu0 0.0
    %366 = vmatprep.subr.mxu0 0.0
    %367 = vmatpush1.msra.mxu0 0.0
    %368 = vmatprep.subr.mxu0 0.0
    %369 = vmatpush1.msra.mxu0 0.0
    %370 = vmatprep.subr.mxu0 0.0
    %371 = vmatpush1.msra.mxu0 0.0
    %372 = vmatprep.subr.mxu0 0.0
    %373 = vmatpush1.msra.mxu0 0.0
    %374 = vmatprep.subr.mxu0 0.0
    %375 = vmatpush1.msra.mxu0 0.0
    %376 = vmatprep.subr.mxu0 0.0
    %377 = vmatpush1.msra.mxu0 0.0
    %378 = vmatprep.subr.mxu0 0.0
    %379 = vmatpush1.msra.mxu0 0.0
    %380 = vmatprep.subr.mxu0 0.0
    %381 = vmatpush1.msra.mxu0 0.0
    %382 = vmatprep.subr.mxu0 0.0
    %383 = vmatpush1.msra.mxu0 0.0
    %384 = vmatprep.subr.mxu0 0.0
    %385 = vmatpush1.msra.mxu0 0.0
    %386 = vmatprep.subr.mxu0 0.0
    %387 = vmatpush1.msra.mxu0 0.0
    %388 = vmatprep.subr.mxu0 0.0
    %389 = vmatpush1.msra.mxu0 0.0
    %390 = vmatprep.subr.mxu0 0.0
    %391 = vmatpush1.msra.mxu0 0.0
    %392 = vmatprep.subr.mxu0 0.0
    %393 = vmatpush1.msra.mxu0 0.0
    %394 = vmatprep.mubr.f32.mxu0 0.0
    %395 = vmatmul.mubr.f32.gmra.mrb[0].mxu0 %v328
    %v396 = vpop.f32.mrb[0].mxu0
    %v397 = vadd.f32 0.0, %v396
    %v398 = vpop.f32.mrb[0].mxu0
    %399 = vdwg.mxu0
    %v400 = vadd.f32 %v187, %v397
    %v401 = vxor.u32 %v400, 2147483648
    %v402 = vmul.f32 %v401, 1.442695
    %v403 = vpow.pop %v402
    %v404 = vadd.f32 %v403, 1.0
    %v405 = vrcp.pop %v404
    %v406 = vmul.f32 1.0, %v405
    %v407 = vtanh.pop %v400
    %v408 = vmul.f32 %v406, %v316
    %410 = vrot.lane.b32.xlu0 %v407, 32
    %v411 = vpop.permute.xlu0 %410
    %v413 = vmul.f32 %v406, %v411
    %415 = vrot.lane.b32.xlu0 %v413, 32
    %v416 = vpop.permute.xlu0 %415
    %v418 = vadd.f32 %v408, %v416
    %v419 = vtanh.pop %v418
    %421 = vrot.lane.b32.xlu0 %v419, 32
    %v422 = vpop.permute.xlu0 %421
    %v424 = vmul.f32 %v406, %v422
    %426 = vrot.lane.b32.xlu0 %v424, 64
    %v427 = vpop.permute.xlu0 %426
    %429 = vst.msk [vmem:[#allocation2 + $0x8] sm:$0xff] %vm224, %v427
    %v430 = vsel %vm224, %v427, 0
    %432 = vmatprep.subr.mxu0 0.0
    %433 = vmatpush1.msra.mxu0 %v220
    %434 = vmatprep.subr.mxu0 0.0
    %435 = vmatpush1.msra.mxu0 %v221
    %436 = vmatprep.subr.mxu0 0.0
    %437 = vmatpush1.msra.mxu0 %v222
    %438 = vmatprep.subr.mxu0 0.0
    %439 = vmatpush1.msra.mxu0 %v223
    %440 = vmatprep.subr.mxu0 0.0
    %441 = vmatpush1.msra.mxu0 0.0
    %442 = vmatprep.subr.mxu0 0.0
    %443 = vmatpush1.msra.mxu0 0.0
    %444 = vmatprep.subr.mxu0 0.0
    %445 = vmatpush1.msra.mxu0 0.0
    %446 = vmatprep.subr.mxu0 0.0
    %447 = vmatpush1.msra.mxu0 0.0
    %448 = vmatprep.subr.mxu0 0.0
    %449 = vmatpush1.msra.mxu0 0.0
    %450 = vmatprep.subr.mxu0 0.0
    %451 = vmatpush1.msra.mxu0 0.0
    %452 = vmatprep.subr.mxu0 0.0
    %453 = vmatpush1.msra.mxu0 0.0
    %454 = vmatprep.subr.mxu0 0.0
    %455 = vmatpush1.msra.mxu0 0.0
    %456 = vmatprep.subr.mxu0 0.0
    %457 = vmatpush1.msra.mxu0 0.0
    %458 = vmatprep.subr.mxu0 0.0
    %459 = vmatpush1.msra.mxu0 0.0
    %460 = vmatprep.subr.mxu0 0.0
    %461 = vmatpush1.msra.mxu0 0.0
    %462 = vmatprep.subr.mxu0 0.0
    %463 = vmatpush1.msra.mxu0 0.0
    %464 = vmatprep.subr.mxu0 0.0
    %465 = vmatpush1.msra.mxu0 0.0
    %466 = vmatprep.subr.mxu0 0.0
    %467 = vmatpush1.msra.mxu0 0.0
    %468 = vmatprep.subr.mxu0 0.0
    %469 = vmatpush1.msra.mxu0 0.0
    %470 = vmatprep.subr.mxu0 0.0
    %471 = vmatpush1.msra.mxu0 0.0
    %472 = vmatprep.subr.mxu0 0.0
    %473 = vmatpush1.msra.mxu0 0.0
    %474 = vmatprep.subr.mxu0 0.0
    %475 = vmatpush1.msra.mxu0 0.0
    %476 = vmatprep.subr.mxu0 0.0
    %477 = vmatpush1.msra.mxu0 0.0
    %478 = vmatprep.subr.mxu0 0.0
    %479 = vmatpush1.msra.mxu0 0.0
    %480 = vmatprep.subr.mxu0 0.0
    %481 = vmatpush1.msra.mxu0 0.0
    %482 = vmatprep.subr.mxu0 0.0
    %483 = vmatpush1.msra.mxu0 0.0
    %484 = vmatprep.subr.mxu0 0.0
    %485 = vmatpush1.msra.mxu0 0.0
    %486 = vmatprep.subr.mxu0 0.0
    %487 = vmatpush1.msra.mxu0 0.0
    %488 = vmatprep.subr.mxu0 0.0
    %489 = vmatpush1.msra.mxu0 0.0
    %490 = vmatprep.subr.mxu0 0.0
    %491 = vmatpush1.msra.mxu0 0.0
    %492 = vmatprep.subr.mxu0 0.0
    %493 = vmatpush1.msra.mxu0 0.0
    %494 = vmatprep.subr.mxu0 0.0
    %495 = vmatpush1.msra.mxu0 0.0
    %496 = vmatprep.mubr.f32.mxu0 0.0
    %497 = vmatmul.mubr.f32.gmra.mrb[0].mxu0 %v430
    %v498 = vpop.f32.mrb[0].mxu0
    %v499 = vadd.f32 0.0, %v498
    %v500 = vpop.f32.mrb[0].mxu0
    %501 = vdwg.mxu0
    %v502 = vadd.f32 %v192, %v499
    %v503 = vxor.u32 %v502, 2147483648
    %v504 = vmul.f32 %v503, 1.442695
    %v505 = vpow.pop %v504
    %v506 = vadd.f32 %v505, 1.0
    %v507 = vrcp.pop %v506
    %v508 = vmul.f32 1.0, %v507
    %v509 = vtanh.pop %v502
    %v510 = vmul.f32 %v508, %v418
    %512 = vrot.lane.b32.xlu0 %v509, 32
    %v513 = vpop.permute.xlu0 %512
    %v515 = vmul.f32 %v508, %v513
    %517 = vrot.lane.b32.xlu0 %v515, 32
    %v518 = vpop.permute.xlu0 %517
    %v520 = vadd.f32 %v510, %v518
    %v521 = vtanh.pop %v520
    %523 = vrot.lane.b32.xlu0 %v521, 32
    %v524 = vpop.permute.xlu0 %523
    %v526 = vmul.f32 %v508, %v524
    %528 = vrot.lane.b32.xlu0 %v526, 64
    %v529 = vpop.permute.xlu0 %528
    %531 = vst.msk [vmem:[#allocation2 + $0x10] sm:$0xff] %vm224, %v529
    %v532 = vsel %vm224, %v529, 0
    %534 = vmatprep.subr.mxu0 0.0
    %535 = vmatpush1.msra.mxu0 %v220
    %536 = vmatprep.subr.mxu0 0.0
    %537 = vmatpush1.msra.mxu0 %v221
    %538 = vmatprep.subr.mxu0 0.0
    %539 = vmatpush1.msra.mxu0 %v222
    %540 = vmatprep.subr.mxu0 0.0
    %541 = vmatpush1.msra.mxu0 %v223
    %542 = vmatprep.subr.mxu0 0.0
    %543 = vmatpush1.msra.mxu0 0.0
    %544 = vmatprep.subr.mxu0 0.0
    %545 = vmatpush1.msra.mxu0 0.0
    %546 = vmatprep.subr.mxu0 0.0
    %547 = vmatpush1.msra.mxu0 0.0
    %548 = vmatprep.subr.mxu0 0.0
    %549 = vmatpush1.msra.mxu0 0.0
    %550 = vmatprep.subr.mxu0 0.0
    %551 = vmatpush1.msra.mxu0 0.0
    %552 = vmatprep.subr.mxu0 0.0
    %553 = vmatpush1.msra.mxu0 0.0
    %554 = vmatprep.subr.mxu0 0.0
    %555 = vmatpush1.msra.mxu0 0.0
    %556 = vmatprep.subr.mxu0 0.0
    %557 = vmatpush1.msra.mxu0 0.0
    %558 = vmatprep.subr.mxu0 0.0
    %559 = vmatpush1.msra.mxu0 0.0
    %560 = vmatprep.subr.mxu0 0.0
    %561 = vmatpush1.msra.mxu0 0.0
    %562 = vmatprep.subr.mxu0 0.0
    %563 = vmatpush1.msra.mxu0 0.0
    %564 = vmatprep.subr.mxu0 0.0
    %565 = vmatpush1.msra.mxu0 0.0
    %566 = vmatprep.subr.mxu0 0.0
    %567 = vmatpush1.msra.mxu0 0.0
    %568 = vmatprep.subr.mxu0 0.0
    %569 = vmatpush1.msra.mxu0 0.0
    %570 = vmatprep.subr.mxu0 0.0
    %571 = vmatpush1.msra.mxu0 0.0
    %572 = vmatprep.subr.mxu0 0.0
    %573 = vmatpush1.msra.mxu0 0.0
    %574 = vmatprep.subr.mxu0 0.0
    %575 = vmatpush1.msra.mxu0 0.0
    %576 = vmatprep.subr.mxu0 0.0
    %577 = vmatpush1.msra.mxu0 0.0
    %578 = vmatprep.subr.mxu0 0.0
    %579 = vmatpush1.msra.mxu0 0.0
    %580 = vmatprep.subr.mxu0 0.0
    %581 = vmatpush1.msra.mxu0 0.0
    %582 = vmatprep.subr.mxu0 0.0
    %583 = vmatpush1.msra.mxu0 0.0
    %584 = vmatprep.subr.mxu0 0.0
    %585 = vmatpush1.msra.mxu0 0.0
    %586 = vmatprep.subr.mxu0 0.0
    %587 = vmatpush1.msra.mxu0 0.0
    %588 = vmatprep.subr.mxu0 0.0
    %589 = vmatpush1.msra.mxu0 0.0
    %590 = vmatprep.subr.mxu0 0.0
    %591 = vmatpush1.msra.mxu0 0.0
    %592 = vmatprep.subr.mxu0 0.0
    %593 = vmatpush1.msra.mxu0 0.0
    %594 = vmatprep.subr.mxu0 0.0
    %595 = vmatpush1.msra.mxu0 0.0
    %596 = vmatprep.subr.mxu0 0.0
    %597 = vmatpush1.msra.mxu0 0.0
    %598 = vmatprep.mubr.f32.mxu0 0.0
    %599 = vmatmul.mubr.f32.gmra.mrb[0].mxu0 %v532
    %v600 = vpop.f32.mrb[0].mxu0
    %v601 = vadd.f32 0.0, %v600
    %v602 = vpop.f32.mrb[0].mxu0
    %603 = vdwg.mxu0
    %v604 = vadd.f32 %v197, %v601
    %v605 = vxor.u32 %v604, 2147483648
    %v606 = vmul.f32 %v605, 1.442695
    %v607 = vpow.pop %v606
    %v608 = vadd.f32 %v607, 1.0
    %v609 = vrcp.pop %v608
    %v610 = vmul.f32 1.0, %v609
    %v611 = vtanh.pop %v604
    %v612 = vmul.f32 %v610, %v520
    %614 = vrot.lane.b32.xlu0 %v611, 32
    %v615 = vpop.permute.xlu0 %614
    %v617 = vmul.f32 %v610, %v615
    %619 = vrot.lane.b32.xlu0 %v617, 32
    %v620 = vpop.permute.xlu0 %619
    %v622 = vadd.f32 %v612, %v620
    %v623 = vtanh.pop %v622
    %625 = vrot.lane.b32.xlu0 %v623, 32
    %v626 = vpop.permute.xlu0 %625
    %v628 = vmul.f32 %v610, %v626
    %630 = vrot.lane.b32.xlu0 %v628, 64
    %v631 = vpop.permute.xlu0 %630
    %633 = vst.msk [vmem:[#allocation2 + $0x18] sm:$0xff] %vm224, %v631
    %v634 = vsel %vm224, %v631, 0
    %636 = vmatprep.subr.mxu0 0.0
    %637 = vmatpush1.msra.mxu0 %v220
    %638 = vmatprep.subr.mxu0 0.0
    %639 = vmatpush1.msra.mxu0 %v221
    %640 = vmatprep.subr.mxu0 0.0
    %641 = vmatpush1.msra.mxu0 %v222
    %642 = vmatprep.subr.mxu0 0.0
    %643 = vmatpush1.msra.mxu0 %v223
    %644 = vmatprep.subr.mxu0 0.0
    %645 = vmatpush1.msra.mxu0 0.0
    %646 = vmatprep.subr.mxu0 0.0
    %647 = vmatpush1.msra.mxu0 0.0
    %648 = vmatprep.subr.mxu0 0.0
    %649 = vmatpush1.msra.mxu0 0.0
    %650 = vmatprep.subr.mxu0 0.0
    %651 = vmatpush1.msra.mxu0 0.0
    %652 = vmatprep.subr.mxu0 0.0
    %653 = vmatpush1.msra.mxu0 0.0
    %654 = vmatprep.subr.mxu0 0.0
    %655 = vmatpush1.msra.mxu0 0.0
    %656 = vmatprep.subr.mxu0 0.0
    %657 = vmatpush1.msra.mxu0 0.0
    %658 = vmatprep.subr.mxu0 0.0
    %659 = vmatpush1.msra.mxu0 0.0
    %660 = vmatprep.subr.mxu0 0.0
    %661 = vmatpush1.msra.mxu0 0.0
    %662 = vmatprep.subr.mxu0 0.0
    %663 = vmatpush1.msra.mxu0 0.0
    %664 = vmatprep.subr.mxu0 0.0
    %665 = vmatpush1.msra.mxu0 0.0
    %666 = vmatprep.subr.mxu0 0.0
    %667 = vmatpush1.msra.mxu0 0.0
    %668 = vmatprep.subr.mxu0 0.0
    %669 = vmatpush1.msra.mxu0 0.0
    %670 = vmatprep.subr.mxu0 0.0
    %671 = vmatpush1.msra.mxu0 0.0
    %672 = vmatprep.subr.mxu0 0.0
    %673 = vmatpush1.msra.mxu0 0.0
    %674 = vmatprep.subr.mxu0 0.0
    %675 = vmatpush1.msra.mxu0 0.0
    %676 = vmatprep.subr.mxu0 0.0
    %677 = vmatpush1.msra.mxu0 0.0
    %678 = vmatprep.subr.mxu0 0.0
    %679 = vmatpush1.msra.mxu0 0.0
    %680 = vmatprep.subr.mxu0 0.0
    %681 = vmatpush1.msra.mxu0 0.0
    %682 = vmatprep.subr.mxu0 0.0
    %683 = vmatpush1.msra.mxu0 0.0
    %684 = vmatprep.subr.mxu0 0.0
    %685 = vmatpush1.msra.mxu0 0.0
    %686 = vmatprep.subr.mxu0 0.0
    %687 = vmatpush1.msra.mxu0 0.0
    %688 = vmatprep.subr.mxu0 0.0
    %689 = vmatpush1.msra.mxu0 0.0
    %690 = vmatprep.subr.mxu0 0.0
    %691 = vmatpush1.msra.mxu0 0.0
    %692 = vmatprep.subr.mxu0 0.0
    %693 = vmatpush1.msra.mxu0 0.0
    %694 = vmatprep.subr.mxu0 0.0
    %695 = vmatpush1.msra.mxu0 0.0
    %696 = vmatprep.subr.mxu0 0.0
    %697 = vmatpush1.msra.mxu0 0.0
    %698 = vmatprep.subr.mxu0 0.0
    %699 = vmatpush1.msra.mxu0 0.0
    %700 = vmatprep.mubr.f32.mxu0 0.0
    %701 = vmatmul.mubr.f32.gmra.mrb[0].mxu0 %v634
    %v702 = vpop.f32.mrb[0].mxu0
    %v703 = vadd.f32 0.0, %v702
    %v704 = vpop.f32.mrb[0].mxu0
    %705 = vdwg.mxu0
    %v706 = vadd.f32 %v202, %v703
    %v707 = vxor.u32 %v706, 2147483648
    %v708 = vmul.f32 %v707, 1.442695
    %v709 = vpow.pop %v708
    %v710 = vadd.f32 %v709, 1.0
    %v711 = vrcp.pop %v710
    %v712 = vmul.f32 1.0, %v711
    %v713 = vtanh.pop %v706
    %v714 = vmul.f32 %v712, %v622
    %716 = vrot.lane.b32.xlu0 %v713, 32
    %v717 = vpop.permute.xlu0 %716
    %v719 = vmul.f32 %v712, %v717
    %721 = vrot.lane.b32.xlu0 %v719, 32
    %v722 = vpop.permute.xlu0 %721
    %v724 = vadd.f32 %v714, %v722
    %v725 = vtanh.pop %v724
    %727 = vrot.lane.b32.xlu0 %v725, 32
    %v728 = vpop.permute.xlu0 %727
    %v730 = vmul.f32 %v712, %v728
    %732 = vrot.lane.b32.xlu0 %v730, 64
    %v733 = vpop.permute.xlu0 %732
    %735 = vst.msk [vmem:[#allocation2 + $0x20] sm:$0xff] %vm224, %v733
    %v736 = vsel %vm224, %v733, 0
    %738 = vmatprep.subr.mxu0 0.0
    %739 = vmatpush1.msra.mxu0 %v220
    %740 = vmatprep.subr.mxu0 0.0
    %741 = vmatpush1.msra.mxu0 %v221
    %742 = vmatprep.subr.mxu0 0.0
    %743 = vmatpush1.msra.mxu0 %v222
    %744 = vmatprep.subr.mxu0 0.0
    %745 = vmatpush1.msra.mxu0 %v223
    %746 = vmatprep.subr.mxu0 0.0
    %747 = vmatpush1.msra.mxu0 0.0
    %748 = vmatprep.subr.mxu0 0.0
    %749 = vmatpush1.msra.mxu0 0.0
    %750 = vmatprep.subr.mxu0 0.0
    %751 = vmatpush1.msra.mxu0 0.0
    %752 = vmatprep.subr.mxu0 0.0
    %753 = vmatpush1.msra.mxu0 0.0
    %754 = vmatprep.subr.mxu0 0.0
    %755 = vmatpush1.msra.mxu0 0.0
    %756 = vmatprep.subr.mxu0 0.0
    %757 = vmatpush1.msra.mxu0 0.0
    %758 = vmatprep.subr.mxu0 0.0
    %759 = vmatpush1.msra.mxu0 0.0
    %760 = vmatprep.subr.mxu0 0.0
    %761 = vmatpush1.msra.mxu0 0.0
    %762 = vmatprep.subr.mxu0 0.0
    %763 = vmatpush1.msra.mxu0 0.0
    %764 = vmatprep.subr.mxu0 0.0
    %765 = vmatpush1.msra.mxu0 0.0
    %766 = vmatprep.subr.mxu0 0.0
    %767 = vmatpush1.msra.mxu0 0.0
    %768 = vmatprep.subr.mxu0 0.0
    %769 = vmatpush1.msra.mxu0 0.0
    %770 = vmatprep.subr.mxu0 0.0
    %771 = vmatpush1.msra.mxu0 0.0
    %772 = vmatprep.subr.mxu0 0.0
    %773 = vmatpush1.msra.mxu0 0.0
    %774 = vmatprep.subr.mxu0 0.0
    %775 = vmatpush1.msra.mxu0 0.0
    %776 = vmatprep.subr.mxu0 0.0
    %777 = vmatpush1.msra.mxu0 0.0
    %778 = vmatprep.subr.mxu0 0.0
    %779 = vmatpush1.msra.mxu0 0.0
    %780 = vmatprep.subr.mxu0 0.0
    %781 = vmatpush1.msra.mxu0 0.0
    %782 = vmatprep.subr.mxu0 0.0
    %783 = vmatpush1.msra.mxu0 0.0
    %784 = vmatprep.subr.mxu0 0.0
    %785 = vmatpush1.msra.mxu0 0.0
    %786 = vmatprep.subr.mxu0 0.0
    %787 = vmatpush1.msra.mxu0 0.0
    %788 = vmatprep.subr.mxu0 0.0
    %789 = vmatpush1.msra.mxu0 0.0
    %790 = vmatprep.subr.mxu0 0.0
    %791 = vmatpush1.msra.mxu0 0.0
    %792 = vmatprep.subr.mxu0 0.0
    %793 = vmatpush1.msra.mxu0 0.0
    %794 = vmatprep.subr.mxu0 0.0
    %795 = vmatpush1.msra.mxu0 0.0
    %796 = vmatprep.subr.mxu0 0.0
    %797 = vmatpush1.msra.mxu0 0.0
    %798 = vmatprep.subr.mxu0 0.0
    %799 = vmatpush1.msra.mxu0 0.0
    %800 = vmatprep.subr.mxu0 0.0
    %801 = vmatpush1.msra.mxu0 0.0
    %802 = vmatprep.mubr.f32.mxu0 0.0
    %803 = vmatmul.mubr.f32.gmra.mrb[0].mxu0 %v736
    %v804 = vpop.f32.mrb[0].mxu0
    %v805 = vadd.f32 0.0, %v804
    %v806 = vpop.f32.mrb[0].mxu0
    %807 = vdwg.mxu0
    %v808 = vadd.f32 %v207, %v805
    %v809 = vxor.u32 %v808, 2147483648
    %v810 = vmul.f32 %v809, 1.442695
    %v811 = vpow.pop %v810
    %v812 = vadd.f32 %v811, 1.0
    %v813 = vrcp.pop %v812
    %v814 = vmul.f32 1.0, %v813
    %v815 = vtanh.pop %v808
    %v816 = vmul.f32 %v814, %v724
    %818 = vrot.lane.b32.xlu0 %v815, 32
    %v819 = vpop.permute.xlu0 %818
    %v821 = vmul.f32 %v814, %v819
    %823 = vrot.lane.b32.xlu0 %v821, 32
    %v824 = vpop.permute.xlu0 %823
    %v826 = vadd.f32 %v816, %v824
    %v827 = vtanh.pop %v826
    %829 = vrot.lane.b32.xlu0 %v827, 32
    %v830 = vpop.permute.xlu0 %829
    %v832 = vmul.f32 %v814, %v830
    %834 = vrot.lane.b32.xlu0 %v832, 64
    %v835 = vpop.permute.xlu0 %834
    %837 = vst.msk [vmem:[#allocation2 + $0x28] sm:$0xff] %vm224, %v835
    %v838 = vsel %vm224, %v835, 0
    %840 = vmatprep.subr.mxu0 0.0
    %841 = vmatpush1.msra.mxu0 %v220
    %842 = vmatprep.subr.mxu0 0.0
    %843 = vmatpush1.msra.mxu0 %v221
    %844 = vmatprep.subr.mxu0 0.0
    %845 = vmatpush1.msra.mxu0 %v222
    %846 = vmatprep.subr.mxu0 0.0
    %847 = vmatpush1.msra.mxu0 %v223
    %848 = vmatprep.subr.mxu0 0.0
    %849 = vmatpush1.msra.mxu0 0.0
    %850 = vmatprep.subr.mxu0 0.0
    %851 = vmatpush1.msra.mxu0 0.0
    %852 = vmatprep.subr.mxu0 0.0
    %853 = vmatpush1.msra.mxu0 0.0
    %854 = vmatprep.subr.mxu0 0.0
    %855 = vmatpush1.msra.mxu0 0.0
    %856 = vmatprep.subr.mxu0 0.0
    %857 = vmatpush1.msra.mxu0 0.0
    %858 = vmatprep.subr.mxu0 0.0
    %859 = vmatpush1.msra.mxu0 0.0
    %860 = vmatprep.subr.mxu0 0.0
    %861 = vmatpush1.msra.mxu0 0.0
    %862 = vmatprep.subr.mxu0 0.0
    %863 = vmatpush1.msra.mxu0 0.0
    %864 = vmatprep.subr.mxu0 0.0
    %865 = vmatpush1.msra.mxu0 0.0
    %866 = vmatprep.subr.mxu0 0.0
    %867 = vmatpush1.msra.mxu0 0.0
    %868 = vmatprep.subr.mxu0 0.0
    %869 = vmatpush1.msra.mxu0 0.0
    %870 = vmatprep.subr.mxu0 0.0
    %871 = vmatpush1.msra.mxu0 0.0
    %872 = vmatprep.subr.mxu0 0.0
    %873 = vmatpush1.msra.mxu0 0.0
    %874 = vmatprep.subr.mxu0 0.0
    %875 = vmatpush1.msra.mxu0 0.0
    %876 = vmatprep.subr.mxu0 0.0
    %877 = vmatpush1.msra.mxu0 0.0
    %878 = vmatprep.subr.mxu0 0.0
    %879 = vmatpush1.msra.mxu0 0.0
    %880 = vmatprep.subr.mxu0 0.0
    %881 = vmatpush1.msra.mxu0 0.0
    %882 = vmatprep.subr.mxu0 0.0
    %883 = vmatpush1.msra.mxu0 0.0
    %884 = vmatprep.subr.mxu0 0.0
    %885 = vmatpush1.msra.mxu0 0.0
    %886 = vmatprep.subr.mxu0 0.0
    %887 = vmatpush1.msra.mxu0 0.0
    %888 = vmatprep.subr.mxu0 0.0
    %889 = vmatpush1.msra.mxu0 0.0
    %890 = vmatprep.subr.mxu0 0.0
    %891 = vmatpush1.msra.mxu0 0.0
    %892 = vmatprep.subr.mxu0 0.0
    %893 = vmatpush1.msra.mxu0 0.0
    %894 = vmatprep.subr.mxu0 0.0
    %895 = vmatpush1.msra.mxu0 0.0
    %896 = vmatprep.subr.mxu0 0.0
    %897 = vmatpush1.msra.mxu0 0.0
    %898 = vmatprep.subr.mxu0 0.0
    %899 = vmatpush1.msra.mxu0 0.0
    %900 = vmatprep.subr.mxu0 0.0
    %901 = vmatpush1.msra.mxu0 0.0
    %902 = vmatprep.subr.mxu0 0.0
    %903 = vmatpush1.msra.mxu0 0.0
    %904 = vmatprep.mubr.f32.mxu0 0.0
    %905 = vmatmul.mubr.f32.gmra.mrb[0].mxu0 %v838
    %v906 = vpop.f32.mrb[0].mxu0
    %v907 = vadd.f32 0.0, %v906
    %v908 = vpop.f32.mrb[0].mxu0
    %909 = vdwg.mxu0
    %v910 = vadd.f32 %v212, %v907
    %v911 = vxor.u32 %v910, 2147483648
    %v912 = vmul.f32 %v911, 1.442695
    %v913 = vpow.pop %v912
    %v914 = vadd.f32 %v913, 1.0
    %v915 = vrcp.pop %v914
    %v916 = vmul.f32 1.0, %v915
    %v917 = vtanh.pop %v910
    %v918 = vmul.f32 %v916, %v826
    %920 = vrot.lane.b32.xlu0 %v917, 32
    %v921 = vpop.permute.xlu0 %920
    %v923 = vmul.f32 %v916, %v921
    %925 = vrot.lane.b32.xlu0 %v923, 32
    %v926 = vpop.permute.xlu0 %925
    %v928 = vadd.f32 %v918, %v926
    %v929 = vtanh.pop %v928
    %931 = vrot.lane.b32.xlu0 %v929, 32
    %v932 = vpop.permute.xlu0 %931
    %v934 = vmul.f32 %v916, %v932
    %936 = vrot.lane.b32.xlu0 %v934, 64
    %v937 = vpop.permute.xlu0 %936
    %939 = vst.msk [vmem:[#allocation2 + $0x30] sm:$0xff] %vm224, %v937
    %v940 = vsel %vm224, %v937, 0
    %942 = vmatprep.subr.mxu0 0.0
    %943 = vmatpush1.msra.mxu0 %v220
    %944 = vmatprep.subr.mxu0 0.0
    %945 = vmatpush1.msra.mxu0 %v221
    %946 = vmatprep.subr.mxu0 0.0
    %947 = vmatpush1.msra.mxu0 %v222
    %948 = vmatprep.subr.mxu0 0.0
    %949 = vmatpush1.msra.mxu0 %v223
    %950 = vmatprep.subr.mxu0 0.0
    %951 = vmatpush1.msra.mxu0 0.0
    %952 = vmatprep.subr.mxu0 0.0
    %953 = vmatpush1.msra.mxu0 0.0
    %954 = vmatprep.subr.mxu0 0.0
    %955 = vmatpush1.msra.mxu0 0.0
    %956 = vmatprep.subr.mxu0 0.0
    %957 = vmatpush1.msra.mxu0 0.0
    %958 = vmatprep.subr.mxu0 0.0
    %959 = vmatpush1.msra.mxu0 0.0
    %960 = vmatprep.subr.mxu0 0.0
    %961 = vmatpush1.msra.mxu0 0.0
    %962 = vmatprep.subr.mxu0 0.0
    %963 = vmatpush1.msra.mxu0 0.0
    %964 = vmatprep.subr.mxu0 0.0
    %965 = vmatpush1.msra.mxu0 0.0
    %966 = vmatprep.subr.mxu0 0.0
    %967 = vmatpush1.msra.mxu0 0.0
    %968 = vmatprep.subr.mxu0 0.0
    %969 = vmatpush1.msra.mxu0 0.0
    %970 = vmatprep.subr.mxu0 0.0
    %971 = vmatpush1.msra.mxu0 0.0
    %972 = vmatprep.subr.mxu0 0.0
    %973 = vmatpush1.msra.mxu0 0.0
    %974 = vmatprep.subr.mxu0 0.0
    %975 = vmatpush1.msra.mxu0 0.0
    %976 = vmatprep.subr.mxu0 0.0
    %977 = vmatpush1.msra.mxu0 0.0
    %978 = vmatprep.subr.mxu0 0.0
    %979 = vmatpush1.msra.mxu0 0.0
    %980 = vmatprep.subr.mxu0 0.0
    %981 = vmatpush1.msra.mxu0 0.0
    %982 = vmatprep.subr.mxu0 0.0
    %983 = vmatpush1.msra.mxu0 0.0
    %984 = vmatprep.subr.mxu0 0.0
    %985 = vmatpush1.msra.mxu0 0.0
    %986 = vmatprep.subr.mxu0 0.0
    %987 = vmatpush1.msra.mxu0 0.0
    %988 = vmatprep.subr.mxu0 0.0
    %989 = vmatpush1.msra.mxu0 0.0
    %990 = vmatprep.subr.mxu0 0.0
    %991 = vmatpush1.msra.mxu0 0.0
    %992 = vmatprep.subr.mxu0 0.0
    %993 = vmatpush1.msra.mxu0 0.0
    %994 = vmatprep.subr.mxu0 0.0
    %995 = vmatpush1.msra.mxu0 0.0
    %996 = vmatprep.subr.mxu0 0.0
    %997 = vmatpush1.msra.mxu0 0.0
    %998 = vmatprep.subr.mxu0 0.0
    %999 = vmatpush1.msra.mxu0 0.0
    %1000 = vmatprep.subr.mxu0 0.0
    %1001 = vmatpush1.msra.mxu0 0.0
    %1002 = vmatprep.subr.mxu0 0.0
    %1003 = vmatpush1.msra.mxu0 0.0
    %1004 = vmatprep.subr.mxu0 0.0
    %1005 = vmatpush1.msra.mxu0 0.0
    %1006 = vmatprep.mubr.f32.mxu0 0.0
    %1007 = vmatmul.mubr.f32.gmra.mrb[0].mxu0 %v940
    %v1008 = vpop.f32.mrb[0].mxu0
    %v1009 = vadd.f32 0.0, %v1008
    %v1010 = vpop.f32.mrb[0].mxu0
    %1011 = vdwg.mxu0
    %v1012 = vadd.f32 %v217, %v1009
    %v1013 = vxor.u32 %v1012, 2147483648
    %v1014 = vmul.f32 %v1013, 1.442695
    %v1015 = vpow.pop %v1014
    %v1016 = vadd.f32 %v1015, 1.0
    %v1017 = vrcp.pop %v1016
    %v1018 = vmul.f32 1.0, %v1017
    %v1019 = vtanh.pop %v1012
    %v1020 = vmul.f32 %v1018, %v928
    %1022 = vrot.lane.b32.xlu0 %v1019, 32
    %v1023 = vpop.permute.xlu0 %1022
    %v1025 = vmul.f32 %v1018, %v1023
    %1027 = vrot.lane.b32.xlu0 %v1025, 32
    %v1028 = vpop.permute.xlu0 %1027
    %v1030 = vadd.f32 %v1020, %v1028
    %v1031 = vtanh.pop %v1030
    %1033 = vrot.lane.b32.xlu0 %v1031, 32
    %v1034 = vpop.permute.xlu0 %1033
    %v1036 = vmul.f32 %v1018, %v1034
    %1038 = vrot.lane.b32.xlu0 %v1036, 64
    %v1039 = vpop.permute.xlu0 %1038
    %1041 = vst.msk [vmem:[#allocation2 + $0x38] sm:$0xff] %vm224, %v1039
    %v1042 = vld [vmem:[#allocation2] sm:$0xff]
    %v1043 = vld [vmem:[#allocation2 + $0x8] sm:$0xff]
    %v1044 = vld [vmem:[#allocation2 + $0x10] sm:$0xff]
    %v1045 = vld [vmem:[#allocation2 + $0x18] sm:$0xff]
    %v1046 = vld [vmem:[#allocation2 + $0x20] sm:$0xff]
    %v1047 = vld [vmem:[#allocation2 + $0x28] sm:$0xff]
    %v1048 = vld [vmem:[#allocation2 + $0x30] sm:$0xff]
    %v1049 = vld [vmem:[#allocation2 + $0x38] sm:$0xff]
    %v1050 = vld [vmem:[#allocation3 + $0x58] sm:$0xff]
    %v1051 = vld [vmem:[#allocation3 + $0x60] sm:$0xff]
    %v1052 = vld [vmem:[#allocation3 + $0x68] sm:$0xff]
    %v1053 = vld [vmem:[#allocation3 + $0x70] sm:$0xff]
    %1058 = vrot.lane.b32.xlu0 %v1050, 96
    %v1059 = vpop.permute.xlu0 %1058
    %1060 = vrot.lane.b32.xlu0 %v1051, 96
    %v1061 = vpop.permute.xlu0 %1060
    %1062 = vrot.lane.b32.xlu0 %v1052, 96
    %v1063 = vpop.permute.xlu0 %1062
    %1064 = vrot.lane.b32.xlu0 %v1053, 96
    %v1065 = vpop.permute.xlu0 %1064
    %v1071 = vsel %vm224, %v1042, 0
    %v1074 = vsel %vm224, %v1043, 0
    %v1077 = vsel %vm224, %v1044, 0
    %v1080 = vsel %vm224, %v1045, 0
    %v1083 = vsel %vm224, %v1046, 0
    %v1086 = vsel %vm224, %v1047, 0
    %v1089 = vsel %vm224, %v1048, 0
    %v1092 = vsel %vm224, %v1049, 0
    %1094 = vmatprep.subr.mxu0 0.0
    %1095 = vmatpush1.msra.mxu0 %v1059
    %1096 = vmatprep.subr.mxu0 0.0
    %1097 = vmatpush1.msra.mxu0 %v1061
    %1098 = vmatprep.subr.mxu0 0.0
    %1099 = vmatpush1.msra.mxu0 %v1063
    %1100 = vmatprep.subr.mxu0 0.0
    %1101 = vmatpush1.msra.mxu0 %v1065
    %1102 = vmatprep.subr.mxu0 0.0
    %1103 = vmatpush1.msra.mxu0 0.0
    %1104 = vmatprep.subr.mxu0 0.0
    %1105 = vmatpush1.msra.mxu0 0.0
    %1106 = vmatprep.subr.mxu0 0.0
    %1107 = vmatpush1.msra.mxu0 0.0
    %1108 = vmatprep.subr.mxu0 0.0
    %1109 = vmatpush1.msra.mxu0 0.0
    %1110 = vmatprep.subr.mxu0 0.0
    %1111 = vmatpush1.msra.mxu0 0.0
    %1112 = vmatprep.subr.mxu0 0.0
    %1113 = vmatpush1.msra.mxu0 0.0
    %1114 = vmatprep.subr.mxu0 0.0
    %1115 = vmatpush1.msra.mxu0 0.0
    %1116 = vmatprep.subr.mxu0 0.0
    %1117 = vmatpush1.msra.mxu0 0.0
    %1118 = vmatprep.subr.mxu0 0.0
    %1119 = vmatpush1.msra.mxu0 0.0
    %1120 = vmatprep.subr.mxu0 0.0
    %1121 = vmatpush1.msra.mxu0 0.0
    %1122 = vmatprep.subr.mxu0 0.0
    %1123 = vmatpush1.msra.mxu0 0.0
    %1124 = vmatprep.subr.mxu0 0.0
    %1125 = vmatpush1.msra.mxu0 0.0
    %1126 = vmatprep.subr.mxu0 0.0
    %1127 = vmatpush1.msra.mxu0 0.0
    %1128 = vmatprep.subr.mxu0 0.0
    %1129 = vmatpush1.msra.mxu0 0.0
    %1130 = vmatprep.subr.mxu0 0.0
    %1131 = vmatpush1.msra.mxu0 0.0
    %1132 = vmatprep.subr.mxu0 0.0
    %1133 = vmatpush1.msra.mxu0 0.0
    %1134 = vmatprep.subr.mxu0 0.0
    %1135 = vmatpush1.msra.mxu0 0.0
    %1136 = vmatprep.subr.mxu0 0.0
    %1137 = vmatpush1.msra.mxu0 0.0
    %1138 = vmatprep.subr.mxu0 0.0
    %1139 = vmatpush1.msra.mxu0 0.0
    %1140 = vmatprep.subr.mxu0 0.0
    %1141 = vmatpush1.msra.mxu0 0.0
    %1142 = vmatprep.subr.mxu0 0.0
    %1143 = vmatpush1.msra.mxu0 0.0
    %1144 = vmatprep.subr.mxu0 0.0
    %1145 = vmatpush1.msra.mxu0 0.0
    %1146 = vmatprep.subr.mxu0 0.0
    %1147 = vmatpush1.msra.mxu0 0.0
    %1148 = vmatprep.subr.mxu0 0.0
    %1149 = vmatpush1.msra.mxu0 0.0
    %1150 = vmatprep.subr.mxu0 0.0
    %1151 = vmatpush1.msra.mxu0 0.0
    %1152 = vmatprep.subr.mxu0 0.0
    %1153 = vmatpush1.msra.mxu0 0.0
    %1154 = vmatprep.subr.mxu0 0.0
    %1155 = vmatpush1.msra.mxu0 0.0
    %1156 = vmatprep.subr.mxu0 0.0
    %1157 = vmatpush1.msra.mxu0 0.0
    %1158 = vmatprep.mubr.f32.mxu0 0.0
    %1159 = vmatmul.mubr.f32.gmra.mrb[0].mxu0 %v1071
    %v1160 = vpop.f32.mrb[0].mxu0
    %v1161 = vadd.f32 0.0, %v1160
    %v1162 = vpop.f32.mrb[0].mxu0
    %1163 = vmatprep.mubr.f32.mxu0 0.0
    %1164 = vmatmul.mubr.f32.gmra.mrb[0].mxu0 %v1074
    %v1165 = vpop.f32.mrb[0].mxu0
    %v1166 = vadd.f32 0.0, %v1165
    %v1167 = vpop.f32.mrb[0].mxu0
    %1168 = vmatprep.mubr.f32.mxu0 0.0
    %1169 = vmatmul.mubr.f32.gmra.mrb[0].mxu0 %v1077
    %v1170 = vpop.f32.mrb[0].mxu0
    %v1171 = vadd.f32 0.0, %v1170
    %v1172 = vpop.f32.mrb[0].mxu0
    %1173 = vmatprep.mubr.f32.mxu0 0.0
    %1174 = vmatmul.mubr.f32.gmra.mrb[0].mxu0 %v1080
    %v1175 = vpop.f32.mrb[0].mxu0
    %v1176 = vadd.f32 0.0, %v1175
    %v1177 = vpop.f32.mrb[0].mxu0
    %1178 = vmatprep.mubr.f32.mxu0 0.0
    %1179 = vmatmul.mubr.f32.gmra.mrb[0].mxu0 %v1083
    %v1180 = vpop.f32.mrb[0].mxu0
    %v1181 = vadd.f32 0.0, %v1180
    %v1182 = vpop.f32.mrb[0].mxu0
    %1183 = vmatprep.mubr.f32.mxu0 0.0
    %1184 = vmatmul.mubr.f32.gmra.mrb[0].mxu0 %v1086
    %v1185 = vpop.f32.mrb[0].mxu0
    %v1186 = vadd.f32 0.0, %v1185
    %v1187 = vpop.f32.mrb[0].mxu0
    %1188 = vmatprep.mubr.f32.mxu0 0.0
    %1189 = vmatmul.mubr.f32.gmra.mrb[0].mxu0 %v1089
    %v1190 = vpop.f32.mrb[0].mxu0
    %v1191 = vadd.f32 0.0, %v1190
    %v1192 = vpop.f32.mrb[0].mxu0
    %1193 = vmatprep.mubr.f32.mxu0 0.0
    %1194 = vmatmul.mubr.f32.gmra.mrb[0].mxu0 %v1092
    %v1195 = vpop.f32.mrb[0].mxu0
    %v1196 = vadd.f32 0.0, %v1195
    %v1197 = vpop.f32.mrb[0].mxu0
    %1198 = vdwg.mxu0
    %v1199 = vsel %vm224, %v1039, 0
    %1201 = vmatprep.subr.mxu0 0.0
    %1202 = vmatpush1.msra.mxu0 %v1050
    %1203 = vmatprep.subr.mxu0 0.0
    %1204 = vmatpush1.msra.mxu0 %v1051
    %1205 = vmatprep.subr.mxu0 0.0
    %1206 = vmatpush1.msra.mxu0 %v1052
    %1207 = vmatprep.subr.mxu0 0.0
    %1208 = vmatpush1.msra.mxu0 %v1053
    %1209 = vmatprep.subr.mxu0 0.0
    %1210 = vmatpush1.msra.mxu0 0.0
    %1211 = vmatprep.subr.mxu0 0.0
    %1212 = vmatpush1.msra.mxu0 0.0
    %1213 = vmatprep.subr.mxu0 0.0
    %1214 = vmatpush1.msra.mxu0 0.0
    %1215 = vmatprep.subr.mxu0 0.0
    %1216 = vmatpush1.msra.mxu0 0.0
    %1217 = vmatprep.subr.mxu0 0.0
    %1218 = vmatpush1.msra.mxu0 0.0
    %1219 = vmatprep.subr.mxu0 0.0
    %1220 = vmatpush1.msra.mxu0 0.0
    %1221 = vmatprep.subr.mxu0 0.0
    %1222 = vmatpush1.msra.mxu0 0.0
    %1223 = vmatprep.subr.mxu0 0.0
    %1224 = vmatpush1.msra.mxu0 0.0
    %1225 = vmatprep.subr.mxu0 0.0
    %1226 = vmatpush1.msra.mxu0 0.0
    %1227 = vmatprep.subr.mxu0 0.0
    %1228 = vmatpush1.msra.mxu0 0.0
    %1229 = vmatprep.subr.mxu0 0.0
    %1230 = vmatpush1.msra.mxu0 0.0
    %1231 = vmatprep.subr.mxu0 0.0
    %1232 = vmatpush1.msra.mxu0 0.0
    %1233 = vmatprep.subr.mxu0 0.0
    %1234 = vmatpush1.msra.mxu0 0.0
    %1235 = vmatprep.subr.mxu0 0.0
    %1236 = vmatpush1.msra.mxu0 0.0
    %1237 = vmatprep.subr.mxu0 0.0
    %1238 = vmatpush1.msra.mxu0 0.0
    %1239 = vmatprep.subr.mxu0 0.0
    %1240 = vmatpush1.msra.mxu0 0.0
    %1241 = vmatprep.subr.mxu0 0.0
    %1242 = vmatpush1.msra.mxu0 0.0
    %1243 = vmatprep.subr.mxu0 0.0
    %1244 = vmatpush1.msra.mxu0 0.0
    %1245 = vmatprep.subr.mxu0 0.0
    %1246 = vmatpush1.msra.mxu0 0.0
    %1247 = vmatprep.subr.mxu0 0.0
    %1248 = vmatpush1.msra.mxu0 0.0
    %1249 = vmatprep.subr.mxu0 0.0
    %1250 = vmatpush1.msra.mxu0 0.0
    %1251 = vmatprep.subr.mxu0 0.0
    %1252 = vmatpush1.msra.mxu0 0.0
    %1253 = vmatprep.subr.mxu0 0.0
    %1254 = vmatpush1.msra.mxu0 0.0
    %1255 = vmatprep.subr.mxu0 0.0
    %1256 = vmatpush1.msra.mxu0 0.0
    %1257 = vmatprep.subr.mxu0 0.0
    %1258 = vmatpush1.msra.mxu0 0.0
    %1259 = vmatprep.subr.mxu0 0.0
    %1260 = vmatpush1.msra.mxu0 0.0
    %1261 = vmatprep.subr.mxu0 0.0
    %1262 = vmatpush1.msra.mxu0 0.0
    %1263 = vmatprep.subr.mxu0 0.0
    %1264 = vmatpush1.msra.mxu0 0.0
    %1265 = vmatprep.mubr.f32.mxu0 0.0
    %1266 = vmatmul.mubr.f32.gmra.mrb[0].mxu0 %v1199
    %v1267 = vpop.f32.mrb[0].mxu0
    %v1268 = vadd.f32 0.0, %v1267
    %v1269 = vpop.f32.mrb[0].mxu0
    %1270 = vdwg.mxu0
    %v1271 = vand.u32 %v34, 7
    %v1272 = vlaneseq
    %v1273 = vshrl.u32 %v1272, 7
    %vm1274 = vcmp.eq.s32.totalorder %v1271, %v1273
    %v1275 = vsel %vm1274, 0.0, -1e+09
    %vm1276 = vcmask 130048
    %v1278 = vsel %vm1276, %v1268, 0
    %v1281 = vsel %vm1276, %v1161, 0
    %v1284 = vsel %vm1276, %v1166, 0
    %v1287 = vsel %vm1276, %v1171, 0
    %v1290 = vsel %vm1276, %v1176, 0
    %v1293 = vsel %vm1276, %v1181, 0
    %v1296 = vsel %vm1276, %v1186, 0
    %v1299 = vsel %vm1276, %v1191, 0
    %v1302 = vsel %vm1276, %v1196, 0
    %1304 = vmatprep.subr.mxu0 0.0
    %1305 = vmatpush1.xpose.msra.mxu0 %v1281
    %1306 = vmatprep.subr.mxu0 0.0
    %1307 = vmatpush1.xpose.msra.mxu0 %v1284
    %1308 = vmatprep.subr.mxu0 0.0
    %1309 = vmatpush1.xpose.msra.mxu0 %v1287
    %1310 = vmatprep.subr.mxu0 0.0
    %1311 = vmatpush1.xpose.msra.mxu0 %v1290
    %1312 = vmatprep.subr.mxu0 0.0
    %1313 = vmatpush1.xpose.msra.mxu0 %v1293
    %1314 = vmatprep.subr.mxu0 0.0
    %1315 = vmatpush1.xpose.msra.mxu0 %v1296
    %1316 = vmatprep.subr.mxu0 0.0
    %1317 = vmatpush1.xpose.msra.mxu0 %v1299
    %1318 = vmatprep.subr.mxu0 0.0
    %1319 = vmatpush1.xpose.msra.mxu0 %v1302
    %1320 = vmatprep.subr.mxu0 0.0
    %1321 = vmatpush1.xpose.msra.mxu0 0.0
    %1322 = vmatprep.subr.mxu0 0.0
    %1323 = vmatpush1.xpose.msra.mxu0 0.0
    %1324 = vmatprep.subr.mxu0 0.0
    %1325 = vmatpush1.xpose.msra.mxu0 0.0
    %1326 = vmatprep.subr.mxu0 0.0
    %1327 = vmatpush1.xpose.msra.mxu0 0.0
    %1328 = vmatprep.subr.mxu0 0.0
    %1329 = vmatpush1.xpose.msra.mxu0 0.0
    %1330 = vmatprep.subr.mxu0 0.0
    %1331 = vmatpush1.xpose.msra.mxu0 0.0
    %1332 = vmatprep.subr.mxu0 0.0
    %1333 = vmatpush1.xpose.msra.mxu0 0.0
    %1334 = vmatprep.subr.mxu0 0.0
    %1335 = vmatpush1.xpose.msra.mxu0 0.0
    %1336 = vmatprep.subr.mxu0 0.0
    %1337 = vmatpush1.xpose.msra.mxu0 0.0
    %1338 = vmatprep.subr.mxu0 0.0
    %1339 = vmatpush1.xpose.msra.mxu0 0.0
    %1340 = vmatprep.subr.mxu0 0.0
    %1341 = vmatpush1.xpose.msra.mxu0 0.0
    %1342 = vmatprep.subr.mxu0 0.0
    %1343 = vmatpush1.xpose.msra.mxu0 0.0
    %1344 = vmatprep.subr.mxu0 0.0
    %1345 = vmatpush1.xpose.msra.mxu0 0.0
    %1346 = vmatprep.subr.mxu0 0.0
    %1347 = vmatpush1.xpose.msra.mxu0 0.0
    %1348 = vmatprep.subr.mxu0 0.0
    %1349 = vmatpush1.xpose.msra.mxu0 0.0
    %1350 = vmatprep.subr.mxu0 0.0
    %1351 = vmatpush1.xpose.msra.mxu0 0.0
    %1352 = vmatprep.subr.mxu0 0.0
    %1353 = vmatpush1.xpose.msra.mxu0 0.0
    %1354 = vmatprep.subr.mxu0 0.0
    %1355 = vmatpush1.xpose.msra.mxu0 0.0
    %1356 = vmatprep.subr.mxu0 0.0
    %1357 = vmatpush1.xpose.msra.mxu0 0.0
    %1358 = vmatprep.subr.mxu0 0.0
    %1359 = vmatpush1.xpose.msra.mxu0 0.0
    %1360 = vmatprep.subr.mxu0 0.0
    %1361 = vmatpush1.xpose.msra.mxu0 0.0
    %1362 = vmatprep.subr.mxu0 0.0
    %1363 = vmatpush1.xpose.msra.mxu0 0.0
    %1364 = vmatprep.subr.mxu0 0.0
    %1365 = vmatpush1.xpose.msra.mxu0 0.0
    %1366 = vmatprep.subr.mxu0 0.0
    %1367 = vmatpush1.xpose.msra.mxu0 0.0
    %1368 = vmatprep.mubr.f32.mxu0 0.0
    %1369 = vmatmul.mubr.f32.gmra.mrb[0].mxu0 %v1278
    %v1370 = vpop.f32.mrb[0].mxu0
    %v1371 = vadd.f32 0.0, %v1370
    %v1372 = vpop.f32.mrb[0].mxu0
    %1373 = vdwg.mxu0
    %v1374 = vmul.f32 %v1371, 0.25
    %v1375 = vadd.f32 %v1374, %v1275
    %v1376 = vmul.f32 %v1375, 1.442695
    %v1377 = vpow.pop %v1376
    %vm1378 = vcmask 523264
    %v1379 = vsel %vm1378, %v1377, 0.0
    %1380 = vadd.xlane.f32.xlu0 %v1379
    %v1381 = vpop.xlane.xlu0 %1380
    %v1382 = vrcp.pop %v1381
    %v1383 = vmul.f32 %v1377, %v1382
    %1384 = vrot.lane.b32.xlu0 %v1161, 96
    %v1385 = vpop.permute.xlu0 %1384
    %1386 = vrot.lane.b32.xlu0 %v1166, 96
    %v1387 = vpop.permute.xlu0 %1386
    %1388 = vrot.lane.b32.xlu0 %v1171, 96
    %v1389 = vpop.permute.xlu0 %1388
    %1390 = vrot.lane.b32.xlu0 %v1176, 96
    %v1391 = vpop.permute.xlu0 %1390
    %1392 = vrot.lane.b32.xlu0 %v1181, 96
    %v1393 = vpop.permute.xlu0 %1392
    %1394 = vrot.lane.b32.xlu0 %v1186, 96
    %v1395 = vpop.permute.xlu0 %1394
    %1396 = vrot.lane.b32.xlu0 %v1191, 96
    %v1397 = vpop.permute.xlu0 %1396
    %1398 = vrot.lane.b32.xlu0 %v1196, 96
    %v1399 = vpop.permute.xlu0 %1398
    %v1409 = vsel %vm1378, %v1383, 0
    %1411 = vmatprep.subr.mxu0 0.0
    %1412 = vmatpush1.msra.mxu0 %v1385
    %1413 = vmatprep.subr.mxu0 0.0
    %1414 = vmatpush1.msra.mxu0 %v1387
    %1415 = vmatprep.subr.mxu0 0.0
    %1416 = vmatpush1.msra.mxu0 %v1389
    %1417 = vmatprep.subr.mxu0 0.0
    %1418 = vmatpush1.msra.mxu0 %v1391
    %1419 = vmatprep.subr.mxu0 0.0
    %1420 = vmatpush1.msra.mxu0 %v1393
    %1421 = vmatprep.subr.mxu0 0.0
    %1422 = vmatpush1.msra.mxu0 %v1395
    %1423 = vmatprep.subr.mxu0 0.0
    %1424 = vmatpush1.msra.mxu0 %v1397
    %1425 = vmatprep.subr.mxu0 0.0
    %1426 = vmatpush1.msra.mxu0 %v1399
    %1427 = vmatprep.subr.mxu0 0.0
    %1428 = vmatpush1.msra.mxu0 0.0
    %1429 = vmatprep.subr.mxu0 0.0
    %1430 = vmatpush1.msra.mxu0 0.0
    %1431 = vmatprep.subr.mxu0 0.0
    %1432 = vmatpush1.msra.mxu0 0.0
    %1433 = vmatprep.subr.mxu0 0.0
    %1434 = vmatpush1.msra.mxu0 0.0
    %1435 = vmatprep.subr.mxu0 0.0
    %1436 = vmatpush1.msra.mxu0 0.0
    %1437 = vmatprep.subr.mxu0 0.0
    %1438 = vmatpush1.msra.mxu0 0.0
    %1439 = vmatprep.subr.mxu0 0.0
    %1440 = vmatpush1.msra.mxu0 0.0
    %1441 = vmatprep.subr.mxu0 0.0
    %1442 = vmatpush1.msra.mxu0 0.0
    %1443 = vmatprep.subr.mxu0 0.0
    %1444 = vmatpush1.msra.mxu0 0.0
    %1445 = vmatprep.subr.mxu0 0.0
    %1446 = vmatpush1.msra.mxu0 0.0
    %1447 = vmatprep.subr.mxu0 0.0
    %1448 = vmatpush1.msra.mxu0 0.0
    %1449 = vmatprep.subr.mxu0 0.0
    %1450 = vmatpush1.msra.mxu0 0.0
    %1451 = vmatprep.subr.mxu0 0.0
    %1452 = vmatpush1.msra.mxu0 0.0
    %1453 = vmatprep.subr.mxu0 0.0
    %1454 = vmatpush1.msra.mxu0 0.0
    %1455 = vmatprep.subr.mxu0 0.0
    %1456 = vmatpush1.msra.mxu0 0.0
    %1457 = vmatprep.subr.mxu0 0.0
    %1458 = vmatpush1.msra.mxu0 0.0
    %1459 = vmatprep.subr.mxu0 0.0
    %1460 = vmatpush1.msra.mxu0 0.0
    %1461 = vmatprep.subr.mxu0 0.0
    %1462 = vmatpush1.msra.mxu0 0.0
    %1463 = vmatprep.subr.mxu0 0.0
    %1464 = vmatpush1.msra.mxu0 0.0
    %1465 = vmatprep.subr.mxu0 0.0
    %1466 = vmatpush1.msra.mxu0 0.0
    %1467 = vmatprep.subr.mxu0 0.0
    %1468 = vmatpush1.msra.mxu0 0.0
    %1469 = vmatprep.subr.mxu0 0.0
    %1470 = vmatpush1.msra.mxu0 0.0
    %1471 = vmatprep.subr.mxu0 0.0
    %1472 = vmatpush1.msra.mxu0 0.0
    %1473 = vmatprep.subr.mxu0 0.0
    %1474 = vmatpush1.msra.mxu0 0.0
    %1475 = vmatprep.mubr.f32.mxu0 0.0
    %1476 = vmatmul.mubr.f32.gmra.mrb[0].mxu0 %v1409
    %v1477 = vpop.f32.mrb[0].mxu0
    %v1478 = vadd.f32 0.0, %v1477
    %v1479 = vpop.f32.mrb[0].mxu0
    %1480 = vdwg.mxu0
    %1481 = vrot.lane.b32.xlu0 %v1268, 112
    %v1482 = vpop.permute.xlu0 %1481
    %1483 = vrot.lane.b32.xlu0 %v1161, 112
    %v1484 = vpop.permute.xlu0 %1483
    %1485 = vrot.lane.b32.xlu0 %v1166, 112
    %v1486 = vpop.permute.xlu0 %1485
    %1487 = vrot.lane.b32.xlu0 %v1171, 112
    %v1488 = vpop.permute.xlu0 %1487
    %1489 = vrot.lane.b32.xlu0 %v1176, 112
    %v1490 = vpop.permute.xlu0 %1489
    %1491 = vrot.lane.b32.xlu0 %v1181, 112
    %v1492 = vpop.permute.xlu0 %1491
    %1493 = vrot.lane.b32.xlu0 %v1186, 112
    %v1494 = vpop.permute.xlu0 %1493
    %1495 = vrot.lane.b32.xlu0 %v1191, 112
    %v1496 = vpop.permute.xlu0 %1495
    %1497 = vrot.lane.b32.xlu0 %v1196, 112
    %v1498 = vpop.permute.xlu0 %1497
    %v1499 = vsel %vm1276, %v1482, 0
    %v1501 = vsel %vm1276, %v1484, 0
    %v1503 = vsel %vm1276, %v1486, 0
    %v1505 = vsel %vm1276, %v1488, 0
    %v1507 = vsel %vm1276, %v1490, 0
    %v1509 = vsel %vm1276, %v1492, 0
    %v1511 = vsel %vm1276, %v1494, 0
    %v1513 = vsel %vm1276, %v1496, 0
    %v1515 = vsel %vm1276, %v1498, 0
    %1517 = vmatprep.subr.mxu0 0.0
    %1518 = vmatpush1.xpose.msra.mxu0 %v1501
    %1519 = vmatprep.subr.mxu0 0.0
    %1520 = vmatpush1.xpose.msra.mxu0 %v1503
    %1521 = vmatprep.subr.mxu0 0.0
    %1522 = vmatpush1.xpose.msra.mxu0 %v1505
    %1523 = vmatprep.subr.mxu0 0.0
    %1524 = vmatpush1.xpose.msra.mxu0 %v1507
    %1525 = vmatprep.subr.mxu0 0.0
    %1526 = vmatpush1.xpose.msra.mxu0 %v1509
    %1527 = vmatprep.subr.mxu0 0.0
    %1528 = vmatpush1.xpose.msra.mxu0 %v1511
    %1529 = vmatprep.subr.mxu0 0.0
    %1530 = vmatpush1.xpose.msra.mxu0 %v1513
    %1531 = vmatprep.subr.mxu0 0.0
    %1532 = vmatpush1.xpose.msra.mxu0 %v1515
    %1533 = vmatprep.subr.mxu0 0.0
    %1534 = vmatpush1.xpose.msra.mxu0 0.0
    %1535 = vmatprep.subr.mxu0 0.0
    %1536 = vmatpush1.xpose.msra.mxu0 0.0
    %1537 = vmatprep.subr.mxu0 0.0
    %1538 = vmatpush1.xpose.msra.mxu0 0.0
    %1539 = vmatprep.subr.mxu0 0.0
    %1540 = vmatpush1.xpose.msra.mxu0 0.0
    %1541 = vmatprep.subr.mxu0 0.0
    %1542 = vmatpush1.xpose.msra.mxu0 0.0
    %1543 = vmatprep.subr.mxu0 0.0
    %1544 = vmatpush1.xpose.msra.mxu0 0.0
    %1545 = vmatprep.subr.mxu0 0.0
    %1546 = vmatpush1.xpose.msra.mxu0 0.0
    %1547 = vmatprep.subr.mxu0 0.0
    %1548 = vmatpush1.xpose.msra.mxu0 0.0
    %1549 = vmatprep.subr.mxu0 0.0
    %1550 = vmatpush1.xpose.msra.mxu0 0.0
    %1551 = vmatprep.subr.mxu0 0.0
    %1552 = vmatpush1.xpose.msra.mxu0 0.0
    %1553 = vmatprep.subr.mxu0 0.0
    %1554 = vmatpush1.xpose.msra.mxu0 0.0
    %1555 = vmatprep.subr.mxu0 0.0
    %1556 = vmatpush1.xpose.msra.mxu0 0.0
    %1557 = vmatprep.subr.mxu0 0.0
    %1558 = vmatpush1.xpose.msra.mxu0 0.0
    %1559 = vmatprep.subr.mxu0 0.0
    %1560 = vmatpush1.xpose.msra.mxu0 0.0
    %1561 = vmatprep.subr.mxu0 0.0
    %1562 = vmatpush1.xpose.msra.mxu0 0.0
    %1563 = vmatprep.subr.mxu0 0.0
    %1564 = vmatpush1.xpose.msra.mxu0 0.0
    %1565 = vmatprep.subr.mxu0 0.0
    %1566 = vmatpush1.xpose.msra.mxu0 0.0
    %1567 = vmatprep.subr.mxu0 0.0
    %1568 = vmatpush1.xpose.msra.mxu0 0.0
    %1569 = vmatprep.subr.mxu0 0.0
    %1570 = vmatpush1.xpose.msra.mxu0 0.0
    %1571 = vmatprep.subr.mxu0 0.0
    %1572 = vmatpush1.xpose.msra.mxu0 0.0
    %1573 = vmatprep.subr.mxu0 0.0
    %1574 = vmatpush1.xpose.msra.mxu0 0.0
    %1575 = vmatprep.subr.mxu0 0.0
    %1576 = vmatpush1.xpose.msra.mxu0 0.0
    %1577 = vmatprep.subr.mxu0 0.0
    %1578 = vmatpush1.xpose.msra.mxu0 0.0
    %1579 = vmatprep.subr.mxu0 0.0
    %1580 = vmatpush1.xpose.msra.mxu0 0.0
    %1581 = vmatprep.mubr.f32.mxu0 0.0
    %1582 = vmatmul.mubr.f32.gmra.mrb[0].mxu0 %v1499
    %v1583 = vpop.f32.mrb[0].mxu0
    %v1584 = vadd.f32 0.0, %v1583
    %v1585 = vpop.f32.mrb[0].mxu0
    %1586 = vdwg.mxu0
    %v1587 = vmul.f32 %v1584, 0.25
    %v1588 = vadd.f32 %v1587, %v1275
    %v1589 = vmul.f32 %v1588, 1.442695
    %v1590 = vpow.pop %v1589
    %v1591 = vsel %vm1378, %v1590, 0.0
    %1592 = vadd.xlane.f32.xlu0 %v1591
    %v1593 = vpop.xlane.xlu0 %1592
    %v1594 = vrcp.pop %v1593
    %v1595 = vmul.f32 %v1590, %v1594
    %1596 = vrot.lane.b32.xlu0 %v1161, 80
    %v1597 = vpop.permute.xlu0 %1596
    %1598 = vrot.lane.b32.xlu0 %v1166, 80
    %v1599 = vpop.permute.xlu0 %1598
    %1600 = vrot.lane.b32.xlu0 %v1171, 80
    %v1601 = vpop.permute.xlu0 %1600
    %1602 = vrot.lane.b32.xlu0 %v1176, 80
    %v1603 = vpop.permute.xlu0 %1602
    %1604 = vrot.lane.b32.xlu0 %v1181, 80
    %v1605 = vpop.permute.xlu0 %1604
    %1606 = vrot.lane.b32.xlu0 %v1186, 80
    %v1607 = vpop.permute.xlu0 %1606
    %1608 = vrot.lane.b32.xlu0 %v1191, 80
    %v1609 = vpop.permute.xlu0 %1608
    %1610 = vrot.lane.b32.xlu0 %v1196, 80
    %v1611 = vpop.permute.xlu0 %1610
    %v1621 = vsel %vm1378, %v1595, 0
    %1623 = vmatprep.subr.mxu0 0.0
    %1624 = vmatpush1.msra.mxu0 %v1597
    %1625 = vmatprep.subr.mxu0 0.0
    %1626 = vmatpush1.msra.mxu0 %v1599
    %1627 = vmatprep.subr.mxu0 0.0
    %1628 = vmatpush1.msra.mxu0 %v1601
    %1629 = vmatprep.subr.mxu0 0.0
    %1630 = vmatpush1.msra.mxu0 %v1603
    %1631 = vmatprep.subr.mxu0 0.0
    %1632 = vmatpush1.msra.mxu0 %v1605
    %1633 = vmatprep.subr.mxu0 0.0
    %1634 = vmatpush1.msra.mxu0 %v1607
    %1635 = vmatprep.subr.mxu0 0.0
    %1636 = vmatpush1.msra.mxu0 %v1609
    %1637 = vmatprep.subr.mxu0 0.0
    %1638 = vmatpush1.msra.mxu0 %v1611
    %1639 = vmatprep.subr.mxu0 0.0
    %1640 = vmatpush1.msra.mxu0 0.0
    %1641 = vmatprep.subr.mxu0 0.0
    %1642 = vmatpush1.msra.mxu0 0.0
    %1643 = vmatprep.subr.mxu0 0.0
    %1644 = vmatpush1.msra.mxu0 0.0
    %1645 = vmatprep.subr.mxu0 0.0
    %1646 = vmatpush1.msra.mxu0 0.0
    %1647 = vmatprep.subr.mxu0 0.0
    %1648 = vmatpush1.msra.mxu0 0.0
    %1649 = vmatprep.subr.mxu0 0.0
    %1650 = vmatpush1.msra.mxu0 0.0
    %1651 = vmatprep.subr.mxu0 0.0
    %1652 = vmatpush1.msra.mxu0 0.0
    %1653 = vmatprep.subr.mxu0 0.0
    %1654 = vmatpush1.msra.mxu0 0.0
    %1655 = vmatprep.subr.mxu0 0.0
    %1656 = vmatpush1.msra.mxu0 0.0
    %1657 = vmatprep.subr.mxu0 0.0
    %1658 = vmatpush1.msra.mxu0 0.0
    %1659 = vmatprep.subr.mxu0 0.0
    %1660 = vmatpush1.msra.mxu0 0.0
    %1661 = vmatprep.subr.mxu0 0.0
    %1662 = vmatpush1.msra.mxu0 0.0
    %1663 = vmatprep.subr.mxu0 0.0
    %1664 = vmatpush1.msra.mxu0 0.0
    %1665 = vmatprep.subr.mxu0 0.0
    %1666 = vmatpush1.msra.mxu0 0.0
    %1667 = vmatprep.subr.mxu0 0.0
    %1668 = vmatpush1.msra.mxu0 0.0
    %1669 = vmatprep.subr.mxu0 0.0
    %1670 = vmatpush1.msra.mxu0 0.0
    %1671 = vmatprep.subr.mxu0 0.0
    %1672 = vmatpush1.msra.mxu0 0.0
    %1673 = vmatprep.subr.mxu0 0.0
    %1674 = vmatpush1.msra.mxu0 0.0
    %1675 = vmatprep.subr.mxu0 0.0
    %1676 = vmatpush1.msra.mxu0 0.0
    %1677 = vmatprep.subr.mxu0 0.0
    %1678 = vmatpush1.msra.mxu0 0.0
    %1679 = vmatprep.subr.mxu0 0.0
    %1680 = vmatpush1.msra.mxu0 0.0
    %1681 = vmatprep.subr.mxu0 0.0
    %1682 = vmatpush1.msra.mxu0 0.0
    %1683 = vmatprep.subr.mxu0 0.0
    %1684 = vmatpush1.msra.mxu0 0.0
    %1685 = vmatprep.subr.mxu0 0.0
    %1686 = vmatpush1.msra.mxu0 0.0
    %1687 = vmatprep.mubr.f32.mxu0 0.0
    %1688 = vmatmul.mubr.f32.gmra.mrb[0].mxu0 %v1621
    %v1689 = vpop.f32.mrb[0].mxu0
    %v1690 = vadd.f32 0.0, %v1689
    %v1691 = vpop.f32.mrb[0].mxu0
    %1692 = vdwg.mxu0
    %1694 = vrot.lane.b32.xlu0 %v1690, 16
    %v1695 = vpop.permute.xlu0 %1694
    %v1697 = vsel %vm1276, %v1478, %v1695
    %v1699 = vrot.slane %v1697, 2
    %v1701 = vsub.f32 %v1697, %v1699
    %v1702 = vand.u32 2147483647, %v1701
    %v1703 = vmul.f32 %v1697, %v1699
    %v1704 = vld [vmem:[#allocation3 + $0x78] sm:$0xff]
    %v1705 = vld [vmem:[#allocation3 + $0x80] sm:$0xff]
    %v1706 = vld [vmem:[#allocation3 + $0x88] sm:$0xff]
    %v1707 = vld [vmem:[#allocation3 + $0x90] sm:$0xff]
    %v1709 = vsel %vm224, %v1703, 0
    %1711 = vmatprep.subr.mxu0 0.0
    %1712 = vmatpush1.msra.mxu0 %v1704
    %1713 = vmatprep.subr.mxu0 0.0
    %1714 = vmatpush1.msra.mxu0 %v1705
    %1715 = vmatprep.subr.mxu0 0.0
    %1716 = vmatpush1.msra.mxu0 %v1706
    %1717 = vmatprep.subr.mxu0 0.0
    %1718 = vmatpush1.msra.mxu0 %v1707
    %1719 = vmatprep.subr.mxu0 0.0
    %1720 = vmatpush1.msra.mxu0 0.0
    %1721 = vmatprep.subr.mxu0 0.0
    %1722 = vmatpush1.msra.mxu0 0.0
    %1723 = vmatprep.subr.mxu0 0.0
    %1724 = vmatpush1.msra.mxu0 0.0
    %1725 = vmatprep.subr.mxu0 0.0
    %1726 = vmatpush1.msra.mxu0 0.0
    %1727 = vmatprep.subr.mxu0 0.0
    %1728 = vmatpush1.msra.mxu0 0.0
    %1729 = vmatprep.subr.mxu0 0.0
    %1730 = vmatpush1.msra.mxu0 0.0
    %1731 = vmatprep.subr.mxu0 0.0
    %1732 = vmatpush1.msra.mxu0 0.0
    %1733 = vmatprep.subr.mxu0 0.0
    %1734 = vmatpush1.msra.mxu0 0.0
    %1735 = vmatprep.subr.mxu0 0.0
    %1736 = vmatpush1.msra.mxu0 0.0
    %1737 = vmatprep.subr.mxu0 0.0
    %1738 = vmatpush1.msra.mxu0 0.0
    %1739 = vmatprep.subr.mxu0 0.0
    %1740 = vmatpush1.msra.mxu0 0.0
    %1741 = vmatprep.subr.mxu0 0.0
    %1742 = vmatpush1.msra.mxu0 0.0
    %1743 = vmatprep.subr.mxu0 0.0
    %1744 = vmatpush1.msra.mxu0 0.0
    %1745 = vmatprep.subr.mxu0 0.0
    %1746 = vmatpush1.msra.mxu0 0.0
    %1747 = vmatprep.subr.mxu0 0.0
    %1748 = vmatpush1.msra.mxu0 0.0
    %1749 = vmatprep.subr.mxu0 0.0
    %1750 = vmatpush1.msra.mxu0 0.0
    %1751 = vmatprep.subr.mxu0 0.0
    %1752 = vmatpush1.msra.mxu0 0.0
    %1753 = vmatprep.subr.mxu0 0.0
    %1754 = vmatpush1.msra.mxu0 0.0
    %1755 = vmatprep.subr.mxu0 0.0
    %1756 = vmatpush1.msra.mxu0 0.0
    %1757 = vmatprep.subr.mxu0 0.0
    %1758 = vmatpush1.msra.mxu0 0.0
    %1759 = vmatprep.subr.mxu0 0.0
    %1760 = vmatpush1.msra.mxu0 0.0
    %1761 = vmatprep.subr.mxu0 0.0
    %1762 = vmatpush1.msra.mxu0 0.0
    %1763 = vmatprep.subr.mxu0 0.0
    %1764 = vmatpush1.msra.mxu0 0.0
    %1765 = vmatprep.subr.mxu0 0.0
    %1766 = vmatpush1.msra.mxu0 0.0
    %1767 = vmatprep.subr.mxu0 0.0
    %1768 = vmatpush1.msra.mxu0 0.0
    %1769 = vmatprep.subr.mxu0 0.0
    %1770 = vmatpush1.msra.mxu0 0.0
    %1771 = vmatprep.subr.mxu0 0.0
    %1772 = vmatpush1.msra.mxu0 0.0
    %1773 = vmatprep.subr.mxu0 0.0
    %1774 = vmatpush1.msra.mxu0 0.0
    %1775 = vmatprep.mubr.f32.mxu0 0.0
    %1776 = vmatmul.mubr.f32.gmra.mrb[0].mxu0 %v1709
    %v1777 = vpop.f32.mrb[0].mxu0
    %v1778 = vadd.f32 0.0, %v1777
    %v1779 = vpop.f32.mrb[0].mxu0
    %1780 = vdwg.mxu0
    %1781 = vrot.lane.b32.xlu0 %v1050, 32
    %v1782 = vpop.permute.xlu0 %1781
    %1783 = vrot.lane.b32.xlu0 %v1051, 32
    %v1784 = vpop.permute.xlu0 %1783
    %1785 = vrot.lane.b32.xlu0 %v1052, 32
    %v1786 = vpop.permute.xlu0 %1785
    %1787 = vrot.lane.b32.xlu0 %v1053, 32
    %v1788 = vpop.permute.xlu0 %1787
    %v1794 = vsel %vm224, %v1702, 0
    %1796 = vmatprep.subr.mxu0 0.0
    %1797 = vmatpush1.msra.mxu0 %v1782
    %1798 = vmatprep.subr.mxu0 0.0
    %1799 = vmatpush1.msra.mxu0 %v1784
    %1800 = vmatprep.subr.mxu0 0.0
    %1801 = vmatpush1.msra.mxu0 %v1786
    %1802 = vmatprep.subr.mxu0 0.0
    %1803 = vmatpush1.msra.mxu0 %v1788
    %1804 = vmatprep.subr.mxu0 0.0
    %1805 = vmatpush1.msra.mxu0 0.0
    %1806 = vmatprep.subr.mxu0 0.0
    %1807 = vmatpush1.msra.mxu0 0.0
    %1808 = vmatprep.subr.mxu0 0.0
    %1809 = vmatpush1.msra.mxu0 0.0
    %1810 = vmatprep.subr.mxu0 0.0
    %1811 = vmatpush1.msra.mxu0 0.0
    %1812 = vmatprep.subr.mxu0 0.0
    %1813 = vmatpush1.msra.mxu0 0.0
    %1814 = vmatprep.subr.mxu0 0.0
    %1815 = vmatpush1.msra.mxu0 0.0
    %1816 = vmatprep.subr.mxu0 0.0
    %1817 = vmatpush1.msra.mxu0 0.0
    %1818 = vmatprep.subr.mxu0 0.0
    %1819 = vmatpush1.msra.mxu0 0.0
    %1820 = vmatprep.subr.mxu0 0.0
    %1821 = vmatpush1.msra.mxu0 0.0
    %1822 = vmatprep.subr.mxu0 0.0
    %1823 = vmatpush1.msra.mxu0 0.0
    %1824 = vmatprep.subr.mxu0 0.0
    %1825 = vmatpush1.msra.mxu0 0.0
    %1826 = vmatprep.subr.mxu0 0.0
    %1827 = vmatpush1.msra.mxu0 0.0
    %1828 = vmatprep.subr.mxu0 0.0
    %1829 = vmatpush1.msra.mxu0 0.0
    %1830 = vmatprep.subr.mxu0 0.0
    %1831 = vmatpush1.msra.mxu0 0.0
    %1832 = vmatprep.subr.mxu0 0.0
    %1833 = vmatpush1.msra.mxu0 0.0
    %1834 = vmatprep.subr.mxu0 0.0
    %1835 = vmatpush1.msra.mxu0 0.0
    %1836 = vmatprep.subr.mxu0 0.0
    %1837 = vmatpush1.msra.mxu0 0.0
    %1838 = vmatprep.subr.mxu0 0.0
    %1839 = vmatpush1.msra.mxu0 0.0
    %1840 = vmatprep.subr.mxu0 0.0
    %1841 = vmatpush1.msra.mxu0 0.0
    %1842 = vmatprep.subr.mxu0 0.0
    %1843 = vmatpush1.msra.mxu0 0.0
    %1844 = vmatprep.subr.mxu0 0.0
    %1845 = vmatpush1.msra.mxu0 0.0
    %1846 = vmatprep.subr.mxu0 0.0
    %1847 = vmatpush1.msra.mxu0 0.0
    %1848 = vmatprep.subr.mxu0 0.0
    %1849 = vmatpush1.msra.mxu0 0.0
    %1850 = vmatprep.subr.mxu0 0.0
    %1851 = vmatpush1.msra.mxu0 0.0
    %1852 = vmatprep.subr.mxu0 0.0
    %1853 = vmatpush1.msra.mxu0 0.0
    %1854 = vmatprep.subr.mxu0 0.0
    %1855 = vmatpush1.msra.mxu0 0.0
    %1856 = vmatprep.subr.mxu0 0.0
    %1857 = vmatpush1.msra.mxu0 0.0
    %1858 = vmatprep.subr.mxu0 0.0
    %1859 = vmatpush1.msra.mxu0 0.0
    %1860 = vmatprep.mubr.f32.mxu0 0.0
    %1861 = vmatmul.mubr.f32.gmra.mrb[0].mxu0 %v1794
    %v1862 = vpop.f32.mrb[0].mxu0
    %v1863 = vadd.f32 %v1778, %v1862
    %v1864 = vpop.f32.mrb[0].mxu0
    %1865 = vdwg.mxu0
    %v1866 = vld [vmem:[#allocation3 + $0x98] sm:$0x1]
    %v1867 = vlaneseq
    %v1868 = vshrl.u32 %v1867, 7
    %v1869 = vsub.s32 0, %v1868
    %v1870 = vrot.slane %v1866, %v1869
    %v1871 = vadd.f32 %v1863, %v1870
    %v1872 = vmax.f32 %v1871, 0.0
    %1877 = vrot.lane.b32.xlu0 %v1704, 96
    %v1878 = vpop.permute.xlu0 %1877
    %1879 = vrot.lane.b32.xlu0 %v1705, 96
    %v1880 = vpop.permute.xlu0 %1879
    %1881 = vrot.lane.b32.xlu0 %v1706, 96
    %v1882 = vpop.permute.xlu0 %1881
    %1883 = vrot.lane.b32.xlu0 %v1707, 96
    %v1884 = vpop.permute.xlu0 %1883
    %1890 = vrot.lane.b32.xlu0 %v1870, 96
    %v1891 = vpop.permute.xlu0 %1890
    %v1894 = vsel %vm224, %v1872, 0
    %1896 = vmatprep.subr.mxu0 0.0
    %1897 = vmatpush1.msra.mxu0 %v1878
    %1898 = vmatprep.subr.mxu0 0.0
    %1899 = vmatpush1.msra.mxu0 %v1880
    %1900 = vmatprep.subr.mxu0 0.0
    %1901 = vmatpush1.msra.mxu0 %v1882
    %1902 = vmatprep.subr.mxu0 0.0
    %1903 = vmatpush1.msra.mxu0 %v1884
    %1904 = vmatprep.subr.mxu0 0.0
    %1905 = vmatpush1.msra.mxu0 0.0
    %1906 = vmatprep.subr.mxu0 0.0
    %1907 = vmatpush1.msra.mxu0 0.0
    %1908 = vmatprep.subr.mxu0 0.0
    %1909 = vmatpush1.msra.mxu0 0.0
    %1910 = vmatprep.subr.mxu0 0.0
    %1911 = vmatpush1.msra.mxu0 0.0
    %1912 = vmatprep.subr.mxu0 0.0
    %1913 = vmatpush1.msra.mxu0 0.0
    %1914 = vmatprep.subr.mxu0 0.0
    %1915 = vmatpush1.msra.mxu0 0.0
    %1916 = vmatprep.subr.mxu0 0.0
    %1917 = vmatpush1.msra.mxu0 0.0
    %1918 = vmatprep.subr.mxu0 0.0
    %1919 = vmatpush1.msra.mxu0 0.0
    %1920 = vmatprep.subr.mxu0 0.0
    %1921 = vmatpush1.msra.mxu0 0.0
    %1922 = vmatprep.subr.mxu0 0.0
    %1923 = vmatpush1.msra.mxu0 0.0
    %1924 = vmatprep.subr.mxu0 0.0
    %1925 = vmatpush1.msra.mxu0 0.0
    %1926 = vmatprep.subr.mxu0 0.0
    %1927 = vmatpush1.msra.mxu0 0.0
    %1928 = vmatprep.subr.mxu0 0.0
    %1929 = vmatpush1.msra.mxu0 0.0
    %1930 = vmatprep.subr.mxu0 0.0
    %1931 = vmatpush1.msra.mxu0 0.0
    %1932 = vmatprep.subr.mxu0 0.0
    %1933 = vmatpush1.msra.mxu0 0.0
    %1934 = vmatprep.subr.mxu0 0.0
    %1935 = vmatpush1.msra.mxu0 0.0
    %1936 = vmatprep.subr.mxu0 0.0
    %1937 = vmatpush1.msra.mxu0 0.0
    %1938 = vmatprep.subr.mxu0 0.0
    %1939 = vmatpush1.msra.mxu0 0.0
    %1940 = vmatprep.subr.mxu0 0.0
    %1941 = vmatpush1.msra.mxu0 0.0
    %1942 = vmatprep.subr.mxu0 0.0
    %1943 = vmatpush1.msra.mxu0 0.0
    %1944 = vmatprep.subr.mxu0 0.0
    %1945 = vmatpush1.msra.mxu0 0.0
    %1946 = vmatprep.subr.mxu0 0.0
    %1947 = vmatpush1.msra.mxu0 0.0
    %1948 = vmatprep.subr.mxu0 0.0
    %1949 = vmatpush1.msra.mxu0 0.0
    %1950 = vmatprep.subr.mxu0 0.0
    %1951 = vmatpush1.msra.mxu0 0.0
    %1952 = vmatprep.subr.mxu0 0.0
    %1953 = vmatpush1.msra.mxu0 0.0
    %1954 = vmatprep.subr.mxu0 0.0
    %1955 = vmatpush1.msra.mxu0 0.0
    %1956 = vmatprep.subr.mxu0 0.0
    %1957 = vmatpush1.msra.mxu0 0.0
    %1958 = vmatprep.subr.mxu0 0.0
    %1959 = vmatpush1.msra.mxu0 0.0
    %1960 = vmatprep.mubr.f32.mxu0 0.0
    %1961 = vmatmul.mubr.f32.gmra.mrb[0].mxu0 %v1894
    %v1962 = vpop.f32.mrb[0].mxu0
    %v1963 = vadd.f32 %v1891, %v1962
    %v1964 = vpop.f32.mrb[0].mxu0
    %1965 = vdwg.mxu0
    %v1966 = vxor.u32 %v1963, 2147483648
    %v1967 = vmul.f32 %v1966, 1.442695
    %v1968 = vpow.pop %v1967
    %v1969 = vadd.f32 %v1968, 1.0
    %v1970 = vrcp.pop %v1969
    %v1971 = vmul.f32 1.0, %v1970
    %vm1972 = vcmask 1024
    %1973 = vst.msk [vmem:[%s2] sm:$0x3] %vm1972, %v1971
    // Predicated region
    $region14: #{model_forward.1} parent=1 // pred_check
      _
    $region15: #{model_forward.1} parent=1 // pred_check_branch
      %1975 = sbr.rel (0) target = $region17
    $region16: #{model_forward.1} parent=1 // pred_region
      _
    $region17: #{model_forward.1} parent=1 // pred_fallthru
      _
    // Predicated region
    $region18: #{model_forward.1} parent=1 // pred_check
      _
    $region19: #{model_forward.1} parent=1 // pred_check_branch
      %1977 = sbr.rel (0) target = $region21
    $region20: #{model_forward.1} parent=1 // pred_region
      _
    $region21: #{model_forward.1} parent=1 // pred_fallthru
      _
    %1978 = vsyncpa [#allocation4], 1

</llo_original>
